<compile_context>
chip_gen: v6e
topology: v6e:2x2x1
jax: 0.10.0
libtpu: 0.0.40
codegen_flags: <defaults>
</compile_context>

<pallas_src>
import jax
import jax.numpy as jnp
from jax import lax
from jax.experimental import pallas as pl
from jax.experimental.pallas import tpu as pltpu


def postagger_kernel(x_ref, wih_ref, whh_ref, b_ref, wo_ref, bo_ref,
                     out_ref, hs_scratch):
    """LSTM(seq) -> Linear -> log_softmax, all in-kernel.

    x_ref   : (S, E)        input embeddings
    wih_ref : (E, 4*HP)     input->gates weights, gate blocks padded to HP lanes
    whh_ref : (HP, 4*HP)    hidden->gates weights, padded (rows >= H are zero)
    b_ref   : (1, 4*HP)     combined bias (b_ih + b_hh), zero in pad lanes
    wo_ref  : (HP, TP)      hidden2tag weight, padded with zero rows/cols
    bo_ref  : (1, TP)       hidden2tag bias, -1e30 in pad lanes
    out_ref : (S, TP)       lane-dense log-softmax tag scores (slice to T outside)
    hs_scratch : (S, HP)    all hidden states (lstm_out), VMEM scratch
    """
    S = x_ref.shape[0]
    HP = whh_ref.shape[0]  # padded per-gate width (multiple of 128)

    # Input contribution for all timesteps in one MXU matmul: (S, E) @ (E, 4*HP)
    xg = (
        jnp.dot(x_ref[...], wih_ref[...], preferred_element_type=jnp.float32)
        + b_ref[...]
    )

    whh = whh_ref[...]

    # h0 = c0 = 0 (PyTorch default when no hidden state is passed).
    # Padding lanes stay exactly 0 through the recurrence (zero weight rows/cols
    # and zero pad bias => pad gates == 0 => f=i=o=0.5, g=0 => c_pad, h_pad == 0).
    h = jnp.zeros((1, HP), jnp.float32)
    c = jnp.zeros((1, HP), jnp.float32)

    # Fully unrolled recurrence: S is a compile-time constant; every index below
    # is static, and h/c stay vreg-resident across steps.
    for t in range(S):
        gates = xg[t:t + 1, :] + jnp.dot(
            h, whh, preferred_element_type=jnp.float32
        )
        i_g = jax.nn.sigmoid(gates[:, 0 * HP:1 * HP])
        f_g = jax.nn.sigmoid(gates[:, 1 * HP:2 * HP])
        g_g = jnp.tanh(gates[:, 2 * HP:3 * HP])
        o_g = jax.nn.sigmoid(gates[:, 3 * HP:4 * HP])

        c = f_g * c + i_g * g_g
        h = o_g * jnp.tanh(c)

        # Static-index store; off the serial dependency chain.
        hs_scratch[pl.ds(t, 1), :] = h

    # hidden2tag: (S, HP) @ (HP, TP) + b  -- lane-dense 128-wide output tile.
    tag_space = (
        jnp.dot(hs_scratch[...], wo_ref[...], preferred_element_type=jnp.float32)
        + bo_ref[...]
    )

    # log_softmax over the tag axis; padded columns carry -1e30 bias so they
    # never win the max and their exp underflows to exactly 0.
    m = jnp.max(tag_space, axis=1, keepdims=True)
    shifted = tag_space - m
    lse = jnp.log(jnp.sum(jnp.exp(shifted), axis=1, keepdims=True))
    out_ref[...] = (shifted - lse).astype(out_ref.dtype)


def pos_tagger_forward(sentence_embeddings, params):
    """Wrapper: parameter padding / layout glue + pallas_call."""
    S, E = sentence_embeddings.shape
    w_ih, w_hh, b_ih, b_hh, w_out, b_out = (
        params["w_ih"], params["w_hh"], params["b_ih"], params["b_hh"],
        params["w_out"], params["b_out"],
    )
    H4 = w_ih.shape[0]
    H = H4 // 4
    T = w_out.shape[0]

    # Pad each gate block and the tag axis up to full 128-lane vregs.
    HP = -(-H // 128) * 128
    TP = -(-T // 128) * 128

    f32 = jnp.float32

    # (4H, E) -> (E, 4*HP), gate block k occupies columns [k*HP, k*HP + H).
    w_ih_g = w_ih.reshape(4, H, E)
    w_ih_pad = jnp.zeros((4, HP, E), f32).at[:, :H, :].set(w_ih_g)
    w_ih_t = w_ih_pad.transpose(2, 0, 1).reshape(E, 4 * HP)          # (E, 4*HP)

    # (4H, H) -> (HP, 4*HP); rows >= H are zero so h's padding lanes contribute 0.
    w_hh_g = w_hh.reshape(4, H, H)
    w_hh_pad = jnp.zeros((4, HP, HP), f32).at[:, :H, :H].set(w_hh_g)
    w_hh_t = w_hh_pad.transpose(2, 0, 1).reshape(HP, 4 * HP)         # (HP, 4*HP)

    # Combined bias, zero in padding lanes (keeps pad gates exactly 0).
    b_g = (b_ih + b_hh).reshape(4, H)
    b = jnp.zeros((4, HP), f32).at[:, :H].set(b_g).reshape(1, 4 * HP)

    # hidden2tag, padded: zero rows beyond H, -1e30 bias beyond T.
    w_out_t = jnp.zeros((HP, TP), f32).at[:H, :T].set(w_out.T)       # (HP, TP)
    b_o = jnp.full((1, TP), -1e30, f32).at[0, :T].set(b_out)         # (1, TP)

    vmem = pl.BlockSpec(memory_space=pltpu.MemorySpace.VMEM)

    out = pl.pallas_call(
        postagger_kernel,
        out_shape=jax.ShapeDtypeStruct((S, TP), jnp.float32),
        in_specs=[vmem, vmem, vmem, vmem, vmem, vmem],
        out_specs=vmem,
        scratch_shapes=[
            pltpu.VMEM((S, HP), jnp.float32),   # all hidden states (lstm_out)
        ],
    )(sentence_embeddings, w_ih_t, w_hh_t, b, w_out_t, b_o)

    # Slice the lane-dense output back to the real tag count.
    return out[:, :T]


def pos_tagger_reference(x, params):
    """Pure-JAX reference matching torch.nn.LSTM / Linear / log_softmax."""
    H = params["w_hh"].shape[1]
    w_ih, w_hh = params["w_ih"], params["w_hh"]
    b = params["b_ih"] + params["b_hh"]

    def step(carry, x_t):
        h, c = carry
        gates = x_t @ w_ih.T + h @ w_hh.T + b
        i_g = jax.nn.sigmoid(gates[0 * H:1 * H])
        f_g = jax.nn.sigmoid(gates[1 * H:2 * H])
        g_g = jnp.tanh(gates[2 * H:3 * H])
        o_g = jax.nn.sigmoid(gates[3 * H:4 * H])
        c_new = f_g * c + i_g * g_g
        h_new = o_g * jnp.tanh(c_new)
        return (h_new, c_new), h_new

    h0 = jnp.zeros((H,), jnp.float32)
    c0 = jnp.zeros((H,), jnp.float32)
    _, hs = lax.scan(step, (h0, c0), x)
    tag_space = hs @ params["w_out"].T + params["b_out"]
    return jax.nn.log_softmax(tag_space, axis=1)


if __name__ == "__main__":
    # Small shapes implied by the module: a sentence of 8 tokens,
    # embedding_dim=16, hidden_dim=32, tagset_size=8.
    SEQ, EMB, HID, TAGS = 8, 16, 32, 8

    key = jax.random.PRNGKey(0)
    ks = jax.random.split(key, 7)
    bound = 1.0 / jnp.sqrt(HID)

    params = {
        # torch.nn.LSTM parameter shapes, gate order (i, f, g, o)
        "w_ih": jax.random.uniform(ks[0], (4 * HID, EMB), jnp.float32, -bound, bound),
        "w_hh": jax.random.uniform(ks[1], (4 * HID, HID), jnp.float32, -bound, bound),
        "b_ih": jax.random.uniform(ks[2], (4 * HID,), jnp.float32, -bound, bound),
        "b_hh": jax.random.uniform(ks[3], (4 * HID,), jnp.float32, -bound, bound),
        # torch.nn.Linear(hidden_dim, tagset_size)
        "w_out": jax.random.uniform(ks[4], (TAGS, HID), jnp.float32, -bound, bound),
        "b_out": jax.random.uniform(ks[5], (TAGS,), jnp.float32, -bound, bound),
    }

    sentence_embeddings = jax.random.normal(ks[6], (SEQ, EMB), jnp.float32)

    out = pos_tagger_forward(sentence_embeddings, params)
    out = jax.block_until_ready(out)

    ref = pos_tagger_reference(sentence_embeddings, params)
    assert out.shape == (SEQ, TAGS)
    assert jnp.allclose(out, ref, atol=1e-5, rtol=1e-5), (
        f"max abs err {jnp.max(jnp.abs(out - ref))}")

    print("KERNEL_OK")
</pallas_src>

<mosaic_0001>
module attributes {stable_mosaic.version = 11 : i64} {
  func.func @postagger_kernel(%arg0: memref<8x16xf32, #tpu.memory_space<vmem>>, %arg1: memref<16x512xf32, #tpu.memory_space<vmem>>, %arg2: memref<128x512xf32, #tpu.memory_space<vmem>>, %arg3: memref<1x512xf32, #tpu.memory_space<vmem>>, %arg4: memref<128x128xf32, #tpu.memory_space<vmem>>, %arg5: memref<1x128xf32, #tpu.memory_space<vmem>>, %arg6: memref<8x128xf32, #tpu.memory_space<vmem>>, %arg7: memref<8x128xf32, #tpu.memory_space<vmem>>) attributes {dimension_semantics = [], scalar_prefetch = 0 : i64, scratch_operands = 1 : i64, tpu.core_type = #tpu.core_type<tc>} {
    %c0 = arith.constant 0 : index
    %c0_0 = arith.constant 0 : index
    %0 = vector.load %arg0[%c0, %c0_0] : memref<8x16xf32, #tpu.memory_space<vmem>>, vector<8x16xf32>
    %c0_1 = arith.constant 0 : index
    %c0_2 = arith.constant 0 : index
    %1 = vector.load %arg1[%c0_1, %c0_2] : memref<16x512xf32, #tpu.memory_space<vmem>>, vector<16x512xf32>
    %cst = arith.constant dense<0.000000e+00> : vector<8x512xf32>
    %2 = tpu.matmul %0, %1, %cst {dimension_numbers = #tpu.dot_dimension_numbers<[1], [0], [0], [1], [0, 0, 1, 1], [], []>} : vector<8x16xf32>, vector<16x512xf32>, vector<8x512xf32> -> vector<8x512xf32>
    %c0_3 = arith.constant 0 : index
    %c0_4 = arith.constant 0 : index
    %3 = vector.load %arg3[%c0_3, %c0_4] : memref<1x512xf32, #tpu.memory_space<vmem>>, vector<1x512xf32>
    %4 = vector.broadcast %3 : vector<1x512xf32> to vector<8x512xf32>
    %5 = arith.addf %2, %4 : vector<8x512xf32>
    %c0_5 = arith.constant 0 : index
    %c0_6 = arith.constant 0 : index
    %6 = vector.load %arg2[%c0_5, %c0_6] : memref<128x512xf32, #tpu.memory_space<vmem>>, vector<128x512xf32>
    %cst_7 = arith.constant 0.000000e+00 : f32
    %7 = vector.broadcast %cst_7 : f32 to vector<1x128xf32>
    %cst_8 = arith.constant 0.000000e+00 : f32
    %8 = vector.broadcast %cst_8 : f32 to vector<1x128xf32>
    %9 = vector.extract_strided_slice %5 {offsets = [0, 0], sizes = [1, 512], strides = [1, 1]} : vector<8x512xf32> to vector<1x512xf32>
    %cst_9 = arith.constant dense<0.000000e+00> : vector<1x512xf32>
    %10 = tpu.matmul %7, %6, %cst_9 {dimension_numbers = #tpu.dot_dimension_numbers<[1], [0], [0], [1], [0, 0, 1, 1], [], []>} : vector<1x128xf32>, vector<128x512xf32>, vector<1x512xf32> -> vector<1x512xf32>
    %11 = arith.addf %9, %10 : vector<1x512xf32>
    %12 = vector.extract_strided_slice %11 {offsets = [0, 0], sizes = [1, 128], strides = [1, 1]} : vector<1x512xf32> to vector<1x128xf32>
    %13 = arith.negf %12 : vector<1x128xf32>
    %14 = math.exp %13 : vector<1x128xf32>
    %cst_10 = arith.constant 1.000000e+00 : f32
    %15 = vector.broadcast %cst_10 : f32 to vector<1x128xf32>
    %16 = arith.addf %15, %14 : vector<1x128xf32>
    %17 = arith.divf %15, %16 : vector<1x128xf32>
    %18 = vector.extract_strided_slice %11 {offsets = [0, 128], sizes = [1, 128], strides = [1, 1]} : vector<1x512xf32> to vector<1x128xf32>
    %19 = arith.negf %18 : vector<1x128xf32>
    %20 = math.exp %19 : vector<1x128xf32>
    %cst_11 = arith.constant 1.000000e+00 : f32
    %21 = vector.broadcast %cst_11 : f32 to vector<1x128xf32>
    %22 = arith.addf %21, %20 : vector<1x128xf32>
    %23 = arith.divf %21, %22 : vector<1x128xf32>
    %24 = vector.extract_strided_slice %11 {offsets = [0, 256], sizes = [1, 128], strides = [1, 1]} : vector<1x512xf32> to vector<1x128xf32>
    %25 = math.tanh %24 : vector<1x128xf32>
    %26 = vector.extract_strided_slice %11 {offsets = [0, 384], sizes = [1, 128], strides = [1, 1]} : vector<1x512xf32> to vector<1x128xf32>
    %27 = arith.negf %26 : vector<1x128xf32>
    %28 = math.exp %27 : vector<1x128xf32>
    %cst_12 = arith.constant 1.000000e+00 : f32
    %29 = vector.broadcast %cst_12 : f32 to vector<1x128xf32>
    %30 = arith.addf %29, %28 : vector<1x128xf32>
    %31 = arith.divf %29, %30 : vector<1x128xf32>
    %32 = arith.mulf %23, %8 : vector<1x128xf32>
    %33 = arith.mulf %17, %25 : vector<1x128xf32>
    %34 = arith.addf %32, %33 : vector<1x128xf32>
    %35 = math.tanh %34 : vector<1x128xf32>
    %36 = arith.mulf %31, %35 : vector<1x128xf32>
    %c0_13 = arith.constant 0 : index
    %c0_14 = arith.constant 0 : index
    %37 = vector.load %arg7[%c0_13, %c0_14] : memref<8x128xf32, #tpu.memory_space<vmem>>, vector<1x128xf32>
    tpu.vector_store %arg7[%c0_13, %c0_14], %36 {strides = array<i32>} : memref<8x128xf32, #tpu.memory_space<vmem>>, vector<1x128xf32>,
    %38 = vector.extract_strided_slice %5 {offsets = [1, 0], sizes = [1, 512], strides = [1, 1]} : vector<8x512xf32> to vector<1x512xf32>
    %cst_15 = arith.constant dense<0.000000e+00> : vector<1x512xf32>
    %39 = tpu.matmul %36, %6, %cst_15 {dimension_numbers = #tpu.dot_dimension_numbers<[1], [0], [0], [1], [0, 0, 1, 1], [], []>} : vector<1x128xf32>, vector<128x512xf32>, vector<1x512xf32> -> vector<1x512xf32>
    %40 = arith.addf %38, %39 : vector<1x512xf32>
    %41 = vector.extract_strided_slice %40 {offsets = [0, 0], sizes = [1, 128], strides = [1, 1]} : vector<1x512xf32> to vector<1x128xf32>
    %42 = arith.negf %41 : vector<1x128xf32>
    %43 = math.exp %42 : vector<1x128xf32>
    %cst_16 = arith.constant 1.000000e+00 : f32
    %44 = vector.broadcast %cst_16 : f32 to vector<1x128xf32>
    %45 = arith.addf %44, %43 : vector<1x128xf32>
    %46 = arith.divf %44, %45 : vector<1x128xf32>
    %47 = vector.extract_strided_slice %40 {offsets = [0, 128], sizes = [1, 128], strides = [1, 1]} : vector<1x512xf32> to vector<1x128xf32>
    %48 = arith.negf %47 : vector<1x128xf32>
    %49 = math.exp %48 : vector<1x128xf32>
    %cst_17 = arith.constant 1.000000e+00 : f32
    %50 = vector.broadcast %cst_17 : f32 to vector<1x128xf32>
    %51 = arith.addf %50, %49 : vector<1x128xf32>
    %52 = arith.divf %50, %51 : vector<1x128xf32>
    %53 = vector.extract_strided_slice %40 {offsets = [0, 256], sizes = [1, 128], strides = [1, 1]} : vector<1x512xf32> to vector<1x128xf32>
    %54 = math.tanh %53 : vector<1x128xf32>
    %55 = vector.extract_strided_slice %40 {offsets = [0, 384], sizes = [1, 128], strides = [1, 1]} : vector<1x512xf32> to vector<1x128xf32>
    %56 = arith.negf %55 : vector<1x128xf32>
    %57 = math.exp %56 : vector<1x128xf32>
    %cst_18 = arith.constant 1.000000e+00 : f32
    %58 = vector.broadcast %cst_18 : f32 to vector<1x128xf32>
    %59 = arith.addf %58, %57 : vector<1x128xf32>
    %60 = arith.divf %58, %59 : vector<1x128xf32>
    %61 = arith.mulf %52, %34 : vector<1x128xf32>
    %62 = arith.mulf %46, %54 : vector<1x128xf32>
    %63 = arith.addf %61, %62 : vector<1x128xf32>
    %64 = math.tanh %63 : vector<1x128xf32>
    %65 = arith.mulf %60, %64 : vector<1x128xf32>
    %c1 = arith.constant 1 : index
    %c0_19 = arith.constant 0 : index
    %66 = vector.load %arg7[%c1, %c0_19] : memref<8x128xf32, #tpu.memory_space<vmem>>, vector<1x128xf32>
    tpu.vector_store %arg7[%c1, %c0_19], %65 {strides = array<i32>} : memref<8x128xf32, #tpu.memory_space<vmem>>, vector<1x128xf32>,
    %67 = vector.extract_strided_slice %5 {offsets = [2, 0], sizes = [1, 512], strides = [1, 1]} : vector<8x512xf32> to vector<1x512xf32>
    %cst_20 = arith.constant dense<0.000000e+00> : vector<1x512xf32>
    %68 = tpu.matmul %65, %6, %cst_20 {dimension_numbers = #tpu.dot_dimension_numbers<[1], [0], [0], [1], [0, 0, 1, 1], [], []>} : vector<1x128xf32>, vector<128x512xf32>, vector<1x512xf32> -> vector<1x512xf32>
    %69 = arith.addf %67, %68 : vector<1x512xf32>
    %70 = vector.extract_strided_slice %69 {offsets = [0, 0], sizes = [1, 128], strides = [1, 1]} : vector<1x512xf32> to vector<1x128xf32>
    %71 = arith.negf %70 : vector<1x128xf32>
    %72 = math.exp %71 : vector<1x128xf32>
    %cst_21 = arith.constant 1.000000e+00 : f32
    %73 = vector.broadcast %cst_21 : f32 to vector<1x128xf32>
    %74 = arith.addf %73, %72 : vector<1x128xf32>
    %75 = arith.divf %73, %74 : vector<1x128xf32>
    %76 = vector.extract_strided_slice %69 {offsets = [0, 128], sizes = [1, 128], strides = [1, 1]} : vector<1x512xf32> to vector<1x128xf32>
    %77 = arith.negf %76 : vector<1x128xf32>
    %78 = math.exp %77 : vector<1x128xf32>
    %cst_22 = arith.constant 1.000000e+00 : f32
    %79 = vector.broadcast %cst_22 : f32 to vector<1x128xf32>
    %80 = arith.addf %79, %78 : vector<1x128xf32>
    %81 = arith.divf %79, %80 : vector<1x128xf32>
    %82 = vector.extract_strided_slice %69 {offsets = [0, 256], sizes = [1, 128], strides = [1, 1]} : vector<1x512xf32> to vector<1x128xf32>
    %83 = math.tanh %82 : vector<1x128xf32>
    %84 = vector.extract_strided_slice %69 {offsets = [0, 384], sizes = [1, 128], strides = [1, 1]} : vector<1x512xf32> to vector<1x128xf32>
    %85 = arith.negf %84 : vector<1x128xf32>
    %86 = math.exp %85 : vector<1x128xf32>
    %cst_23 = arith.constant 1.000000e+00 : f32
    %87 = vector.broadcast %cst_23 : f32 to vector<1x128xf32>
    %88 = arith.addf %87, %86 : vector<1x128xf32>
    %89 = arith.divf %87, %88 : vector<1x128xf32>
    %90 = arith.mulf %81, %63 : vector<1x128xf32>
    %91 = arith.mulf %75, %83 : vector<1x128xf32>
    %92 = arith.addf %90, %91 : vector<1x128xf32>
    %93 = math.tanh %92 : vector<1x128xf32>
    %94 = arith.mulf %89, %93 : vector<1x128xf32>
    %c2 = arith.constant 2 : index
    %c0_24 = arith.constant 0 : index
    %95 = vector.load %arg7[%c2, %c0_24] : memref<8x128xf32, #tpu.memory_space<vmem>>, vector<1x128xf32>
    tpu.vector_store %arg7[%c2, %c0_24], %94 {strides = array<i32>} : memref<8x128xf32, #tpu.memory_space<vmem>>, vector<1x128xf32>,
    %96 = vector.extract_strided_slice %5 {offsets = [3, 0], sizes = [1, 512], strides = [1, 1]} : vector<8x512xf32> to vector<1x512xf32>
    %cst_25 = arith.constant dense<0.000000e+00> : vector<1x512xf32>
    %97 = tpu.matmul %94, %6, %cst_25 {dimension_numbers = #tpu.dot_dimension_numbers<[1], [0], [0], [1], [0, 0, 1, 1], [], []>} : vector<1x128xf32>, vector<128x512xf32>, vector<1x512xf32> -> vector<1x512xf32>
    %98 = arith.addf %96, %97 : vector<1x512xf32>
    %99 = vector.extract_strided_slice %98 {offsets = [0, 0], sizes = [1, 128], strides = [1, 1]} : vector<1x512xf32> to vector<1x128xf32>
    %100 = arith.negf %99 : vector<1x128xf32>
    %101 = math.exp %100 : vector<1x128xf32>
    %cst_26 = arith.constant 1.000000e+00 : f32
    %102 = vector.broadcast %cst_26 : f32 to vector<1x128xf32>
    %103 = arith.addf %102, %101 : vector<1x128xf32>
    %104 = arith.divf %102, %103 : vector<1x128xf32>
    %105 = vector.extract_strided_slice %98 {offsets = [0, 128], sizes = [1, 128], strides = [1, 1]} : vector<1x512xf32> to vector<1x128xf32>
    %106 = arith.negf %105 : vector<1x128xf32>
    %107 = math.exp %106 : vector<1x128xf32>
    %cst_27 = arith.constant 1.000000e+00 : f32
    %108 = vector.broadcast %cst_27 : f32 to vector<1x128xf32>
    %109 = arith.addf %108, %107 : vector<1x128xf32>
    %110 = arith.divf %108, %109 : vector<1x128xf32>
    %111 = vector.extract_strided_slice %98 {offsets = [0, 256], sizes = [1, 128], strides = [1, 1]} : vector<1x512xf32> to vector<1x128xf32>
    %112 = math.tanh %111 : vector<1x128xf32>
    %113 = vector.extract_strided_slice %98 {offsets = [0, 384], sizes = [1, 128], strides = [1, 1]} : vector<1x512xf32> to vector<1x128xf32>
    %114 = arith.negf %113 : vector<1x128xf32>
    %115 = math.exp %114 : vector<1x128xf32>
    %cst_28 = arith.constant 1.000000e+00 : f32
    %116 = vector.broadcast %cst_28 : f32 to vector<1x128xf32>
    %117 = arith.addf %116, %115 : vector<1x128xf32>
    %118 = arith.divf %116, %117 : vector<1x128xf32>
    %119 = arith.mulf %110, %92 : vector<1x128xf32>
    %120 = arith.mulf %104, %112 : vector<1x128xf32>
    %121 = arith.addf %119, %120 : vector<1x128xf32>
    %122 = math.tanh %121 : vector<1x128xf32>
    %123 = arith.mulf %118, %122 : vector<1x128xf32>
    %c3 = arith.constant 3 : index
    %c0_29 = arith.constant 0 : index
    %124 = vector.load %arg7[%c3, %c0_29] : memref<8x128xf32, #tpu.memory_space<vmem>>, vector<1x128xf32>
    tpu.vector_store %arg7[%c3, %c0_29], %123 {strides = array<i32>} : memref<8x128xf32, #tpu.memory_space<vmem>>, vector<1x128xf32>,
    %125 = vector.extract_strided_slice %5 {offsets = [4, 0], sizes = [1, 512], strides = [1, 1]} : vector<8x512xf32> to vector<1x512xf32>
    %cst_30 = arith.constant dense<0.000000e+00> : vector<1x512xf32>
    %126 = tpu.matmul %123, %6, %cst_30 {dimension_numbers = #tpu.dot_dimension_numbers<[1], [0], [0], [1], [0, 0, 1, 1], [], []>} : vector<1x128xf32>, vector<128x512xf32>, vector<1x512xf32> -> vector<1x512xf32>
    %127 = arith.addf %125, %126 : vector<1x512xf32>
    %128 = vector.extract_strided_slice %127 {offsets = [0, 0], sizes = [1, 128], strides = [1, 1]} : vector<1x512xf32> to vector<1x128xf32>
    %129 = arith.negf %128 : vector<1x128xf32>
    %130 = math.exp %129 : vector<1x128xf32>
    %cst_31 = arith.constant 1.000000e+00 : f32
    %131 = vector.broadcast %cst_31 : f32 to vector<1x128xf32>
    %132 = arith.addf %131, %130 : vector<1x128xf32>
    %133 = arith.divf %131, %132 : vector<1x128xf32>
    %134 = vector.extract_strided_slice %127 {offsets = [0, 128], sizes = [1, 128], strides = [1, 1]} : vector<1x512xf32> to vector<1x128xf32>
    %135 = arith.negf %134 : vector<1x128xf32>
    %136 = math.exp %135 : vector<1x128xf32>
    %cst_32 = arith.constant 1.000000e+00 : f32
    %137 = vector.broadcast %cst_32 : f32 to vector<1x128xf32>
    %138 = arith.addf %137, %136 : vector<1x128xf32>
    %139 = arith.divf %137, %138 : vector<1x128xf32>
    %140 = vector.extract_strided_slice %127 {offsets = [0, 256], sizes = [1, 128], strides = [1, 1]} : vector<1x512xf32> to vector<1x128xf32>
    %141 = math.tanh %140 : vector<1x128xf32>
    %142 = vector.extract_strided_slice %127 {offsets = [0, 384], sizes = [1, 128], strides = [1, 1]} : vector<1x512xf32> to vector<1x128xf32>
    %143 = arith.negf %142 : vector<1x128xf32>
    %144 = math.exp %143 : vector<1x128xf32>
    %cst_33 = arith.constant 1.000000e+00 : f32
    %145 = vector.broadcast %cst_33 : f32 to vector<1x128xf32>
    %146 = arith.addf %145, %144 : vector<1x128xf32>
    %147 = arith.divf %145, %146 : vector<1x128xf32>
    %148 = arith.mulf %139, %121 : vector<1x128xf32>
    %149 = arith.mulf %133, %141 : vector<1x128xf32>
    %150 = arith.addf %148, %149 : vector<1x128xf32>
    %151 = math.tanh %150 : vector<1x128xf32>
    %152 = arith.mulf %147, %151 : vector<1x128xf32>
    %c4 = arith.constant 4 : index
    %c0_34 = arith.constant 0 : index
    %153 = vector.load %arg7[%c4, %c0_34] : memref<8x128xf32, #tpu.memory_space<vmem>>, vector<1x128xf32>
    tpu.vector_store %arg7[%c4, %c0_34], %152 {strides = array<i32>} : memref<8x128xf32, #tpu.memory_space<vmem>>, vector<1x128xf32>,
    %154 = vector.extract_strided_slice %5 {offsets = [5, 0], sizes = [1, 512], strides = [1, 1]} : vector<8x512xf32> to vector<1x512xf32>
    %cst_35 = arith.constant dense<0.000000e+00> : vector<1x512xf32>
    %155 = tpu.matmul %152, %6, %cst_35 {dimension_numbers = #tpu.dot_dimension_numbers<[1], [0], [0], [1], [0, 0, 1, 1], [], []>} : vector<1x128xf32>, vector<128x512xf32>, vector<1x512xf32> -> vector<1x512xf32>
    %156 = arith.addf %154, %155 : vector<1x512xf32>
    %157 = vector.extract_strided_slice %156 {offsets = [0, 0], sizes = [1, 128], strides = [1, 1]} : vector<1x512xf32> to vector<1x128xf32>
    %158 = arith.negf %157 : vector<1x128xf32>
    %159 = math.exp %158 : vector<1x128xf32>
    %cst_36 = arith.constant 1.000000e+00 : f32
    %160 = vector.broadcast %cst_36 : f32 to vector<1x128xf32>
    %161 = arith.addf %160, %159 : vector<1x128xf32>
    %162 = arith.divf %160, %161 : vector<1x128xf32>
    %163 = vector.extract_strided_slice %156 {offsets = [0, 128], sizes = [1, 128], strides = [1, 1]} : vector<1x512xf32> to vector<1x128xf32>
    %164 = arith.negf %163 : vector<1x128xf32>
    %165 = math.exp %164 : vector<1x128xf32>
    %cst_37 = arith.constant 1.000000e+00 : f32
    %166 = vector.broadcast %cst_37 : f32 to vector<1x128xf32>
    %167 = arith.addf %166, %165 : vector<1x128xf32>
    %168 = arith.divf %166, %167 : vector<1x128xf32>
    %169 = vector.extract_strided_slice %156 {offsets = [0, 256], sizes = [1, 128], strides = [1, 1]} : vector<1x512xf32> to vector<1x128xf32>
    %170 = math.tanh %169 : vector<1x128xf32>
    %171 = vector.extract_strided_slice %156 {offsets = [0, 384], sizes = [1, 128], strides = [1, 1]} : vector<1x512xf32> to vector<1x128xf32>
    %172 = arith.negf %171 : vector<1x128xf32>
    %173 = math.exp %172 : vector<1x128xf32>
    %cst_38 = arith.constant 1.000000e+00 : f32
    %174 = vector.broadcast %cst_38 : f32 to vector<1x128xf32>
    %175 = arith.addf %174, %173 : vector<1x128xf32>
    %176 = arith.divf %174, %175 : vector<1x128xf32>
    %177 = arith.mulf %168, %150 : vector<1x128xf32>
    %178 = arith.mulf %162, %170 : vector<1x128xf32>
    %179 = arith.addf %177, %178 : vector<1x128xf32>
    %180 = math.tanh %179 : vector<1x128xf32>
    %181 = arith.mulf %176, %180 : vector<1x128xf32>
    %c5 = arith.constant 5 : index
    %c0_39 = arith.constant 0 : index
    %182 = vector.load %arg7[%c5, %c0_39] : memref<8x128xf32, #tpu.memory_space<vmem>>, vector<1x128xf32>
    tpu.vector_store %arg7[%c5, %c0_39], %181 {strides = array<i32>} : memref<8x128xf32, #tpu.memory_space<vmem>>, vector<1x128xf32>,
    %183 = vector.extract_strided_slice %5 {offsets = [6, 0], sizes = [1, 512], strides = [1, 1]} : vector<8x512xf32> to vector<1x512xf32>
    %cst_40 = arith.constant dense<0.000000e+00> : vector<1x512xf32>
    %184 = tpu.matmul %181, %6, %cst_40 {dimension_numbers = #tpu.dot_dimension_numbers<[1], [0], [0], [1], [0, 0, 1, 1], [], []>} : vector<1x128xf32>, vector<128x512xf32>, vector<1x512xf32> -> vector<1x512xf32>
    %185 = arith.addf %183, %184 : vector<1x512xf32>
    %186 = vector.extract_strided_slice %185 {offsets = [0, 0], sizes = [1, 128], strides = [1, 1]} : vector<1x512xf32> to vector<1x128xf32>
    %187 = arith.negf %186 : vector<1x128xf32>
    %188 = math.exp %187 : vector<1x128xf32>
    %cst_41 = arith.constant 1.000000e+00 : f32
    %189 = vector.broadcast %cst_41 : f32 to vector<1x128xf32>
    %190 = arith.addf %189, %188 : vector<1x128xf32>
    %191 = arith.divf %189, %190 : vector<1x128xf32>
    %192 = vector.extract_strided_slice %185 {offsets = [0, 128], sizes = [1, 128], strides = [1, 1]} : vector<1x512xf32> to vector<1x128xf32>
    %193 = arith.negf %192 : vector<1x128xf32>
    %194 = math.exp %193 : vector<1x128xf32>
    %cst_42 = arith.constant 1.000000e+00 : f32
    %195 = vector.broadcast %cst_42 : f32 to vector<1x128xf32>
    %196 = arith.addf %195, %194 : vector<1x128xf32>
    %197 = arith.divf %195, %196 : vector<1x128xf32>
    %198 = vector.extract_strided_slice %185 {offsets = [0, 256], sizes = [1, 128], strides = [1, 1]} : vector<1x512xf32> to vector<1x128xf32>
    %199 = math.tanh %198 : vector<1x128xf32>
    %200 = vector.extract_strided_slice %185 {offsets = [0, 384], sizes = [1, 128], strides = [1, 1]} : vector<1x512xf32> to vector<1x128xf32>
    %201 = arith.negf %200 : vector<1x128xf32>
    %202 = math.exp %201 : vector<1x128xf32>
    %cst_43 = arith.constant 1.000000e+00 : f32
    %203 = vector.broadcast %cst_43 : f32 to vector<1x128xf32>
    %204 = arith.addf %203, %202 : vector<1x128xf32>
    %205 = arith.divf %203, %204 : vector<1x128xf32>
    %206 = arith.mulf %197, %179 : vector<1x128xf32>
    %207 = arith.mulf %191, %199 : vector<1x128xf32>
    %208 = arith.addf %206, %207 : vector<1x128xf32>
    %209 = math.tanh %208 : vector<1x128xf32>
    %210 = arith.mulf %205, %209 : vector<1x128xf32>
    %c6 = arith.constant 6 : index
    %c0_44 = arith.constant 0 : index
    %211 = vector.load %arg7[%c6, %c0_44] : memref<8x128xf32, #tpu.memory_space<vmem>>, vector<1x128xf32>
    tpu.vector_store %arg7[%c6, %c0_44], %210 {strides = array<i32>} : memref<8x128xf32, #tpu.memory_space<vmem>>, vector<1x128xf32>,
    %212 = vector.extract_strided_slice %5 {offsets = [7, 0], sizes = [1, 512], strides = [1, 1]} : vector<8x512xf32> to vector<1x512xf32>
    %cst_45 = arith.constant dense<0.000000e+00> : vector<1x512xf32>
    %213 = tpu.matmul %210, %6, %cst_45 {dimension_numbers = #tpu.dot_dimension_numbers<[1], [0], [0], [1], [0, 0, 1, 1], [], []>} : vector<1x128xf32>, vector<128x512xf32>, vector<1x512xf32> -> vector<1x512xf32>
    %214 = arith.addf %212, %213 : vector<1x512xf32>
    %215 = vector.extract_strided_slice %214 {offsets = [0, 0], sizes = [1, 128], strides = [1, 1]} : vector<1x512xf32> to vector<1x128xf32>
    %216 = arith.negf %215 : vector<1x128xf32>
    %217 = math.exp %216 : vector<1x128xf32>
    %cst_46 = arith.constant 1.000000e+00 : f32
    %218 = vector.broadcast %cst_46 : f32 to vector<1x128xf32>
    %219 = arith.addf %218, %217 : vector<1x128xf32>
    %220 = arith.divf %218, %219 : vector<1x128xf32>
    %221 = vector.extract_strided_slice %214 {offsets = [0, 128], sizes = [1, 128], strides = [1, 1]} : vector<1x512xf32> to vector<1x128xf32>
    %222 = arith.negf %221 : vector<1x128xf32>
    %223 = math.exp %222 : vector<1x128xf32>
    %cst_47 = arith.constant 1.000000e+00 : f32
    %224 = vector.broadcast %cst_47 : f32 to vector<1x128xf32>
    %225 = arith.addf %224, %223 : vector<1x128xf32>
    %226 = arith.divf %224, %225 : vector<1x128xf32>
    %227 = vector.extract_strided_slice %214 {offsets = [0, 256], sizes = [1, 128], strides = [1, 1]} : vector<1x512xf32> to vector<1x128xf32>
    %228 = math.tanh %227 : vector<1x128xf32>
    %229 = vector.extract_strided_slice %214 {offsets = [0, 384], sizes = [1, 128], strides = [1, 1]} : vector<1x512xf32> to vector<1x128xf32>
    %230 = arith.negf %229 : vector<1x128xf32>
    %231 = math.exp %230 : vector<1x128xf32>
    %cst_48 = arith.constant 1.000000e+00 : f32
    %232 = vector.broadcast %cst_48 : f32 to vector<1x128xf32>
    %233 = arith.addf %232, %231 : vector<1x128xf32>
    %234 = arith.divf %232, %233 : vector<1x128xf32>
    %235 = arith.mulf %226, %208 : vector<1x128xf32>
    %236 = arith.mulf %220, %228 : vector<1x128xf32>
    %237 = arith.addf %235, %236 : vector<1x128xf32>
    %238 = math.tanh %237 : vector<1x128xf32>
    %239 = arith.mulf %234, %238 : vector<1x128xf32>
    %c7 = arith.constant 7 : index
    %c0_49 = arith.constant 0 : index
    %240 = vector.load %arg7[%c7, %c0_49] : memref<8x128xf32, #tpu.memory_space<vmem>>, vector<1x128xf32>
    tpu.vector_store %arg7[%c7, %c0_49], %239 {strides = array<i32>} : memref<8x128xf32, #tpu.memory_space<vmem>>, vector<1x128xf32>,
    %c0_50 = arith.constant 0 : index
    %c0_51 = arith.constant 0 : index
    %241 = vector.load %arg7[%c0_50, %c0_51] : memref<8x128xf32, #tpu.memory_space<vmem>>, vector<8x128xf32>
    %c0_52 = arith.constant 0 : index
    %c0_53 = arith.constant 0 : index
    %242 = vector.load %arg4[%c0_52, %c0_53] : memref<128x128xf32, #tpu.memory_space<vmem>>, vector<128x128xf32>
    %cst_54 = arith.constant dense<0.000000e+00> : vector<8x128xf32>
    %243 = tpu.matmul %241, %242, %cst_54 {dimension_numbers = #tpu.dot_dimension_numbers<[1], [0], [0], [1], [0, 0, 1, 1], [], []>} : vector<8x128xf32>, vector<128x128xf32>, vector<8x128xf32> -> vector<8x128xf32>
    %c0_55 = arith.constant 0 : index
    %c0_56 = arith.constant 0 : index
    %244 = vector.load %arg5[%c0_55, %c0_56] : memref<1x128xf32, #tpu.memory_space<vmem>>, vector<1x128xf32>
    %245 = vector.broadcast %244 : vector<1x128xf32> to vector<8x128xf32>
    %246 = arith.addf %243, %245 : vector<8x128xf32>
    %cst_57 = arith.constant dense<0xFF800000> : vector<8xf32>
    %247 = vector.multi_reduction <maximumf>, %246, %cst_57 [1] : vector<8x128xf32> to vector<8xf32>
    %248 = vector.shape_cast %247 : vector<8xf32> to vector<8x1xf32>
    %249 = vector.broadcast %248 : vector<8x1xf32> to vector<8x128xf32>
    %250 = arith.subf %246, %249 : vector<8x128xf32>
    %251 = math.exp %250 : vector<8x128xf32>
    %cst_58 = arith.constant dense<0.000000e+00> : vector<8xf32>
    %252 = vector.multi_reduction <add>, %251, %cst_58 [1] : vector<8x128xf32> to vector<8xf32>
    %253 = vector.shape_cast %252 : vector<8xf32> to vector<8x1xf32>
    %254 = math.log %253 : vector<8x1xf32>
    %255 = vector.broadcast %254 : vector<8x1xf32> to vector<8x128xf32>
    %256 = arith.subf %250, %255 : vector<8x128xf32>
    %c0_59 = arith.constant 0 : index
    %c0_60 = arith.constant 0 : index
    %257 = vector.load %arg6[%c0_59, %c0_60] : memref<8x128xf32, #tpu.memory_space<vmem>>, vector<8x128xf32>
    tpu.vector_store %arg6[%c0_59, %c0_60], %256 {strides = array<i32>} : memref<8x128xf32, #tpu.memory_space<vmem>>, vector<8x128xf32>,
    return
  }
}

</mosaic_0001>

<llo_original>
// kernel: tpu_custom_call.1
$region0: #{tpu_custom_call.1}
  #allocation0 [shape = 'u32[]', space=smem, size = 0x4, offset = 0x4, fixed_abs, tag = 'smem constant byte address 0x4 - core index']
  #allocation1 [shape = 'u32[144,128]{1,0:T(1,128)}', space=vmem, size = 0x12000, scoped, tag = 'internal scratch']
  #allocation2 [shape = 'f32[8,128]{1,0:T(8,128)}', space=vmem, size = 0x1000, scoped, tag = 'scratch operand']
  %s0 = inlined_call_operand.hbm [shape: f32[8,16], index: 0, kind: input, shape index: {}]
  %s1 = inlined_call_operand.hbm [shape: f32[16,512], index: 1, kind: input, shape index: {}]
  %s2 = inlined_call_operand.hbm [shape: f32[128,512], index: 2, kind: input, shape index: {}]
  %s3 = inlined_call_operand.vmem [shape: f32[1,512], index: 3, kind: input, shape index: {}]
  %s4 = inlined_call_operand.hbm [shape: f32[128,128], index: 4, kind: input, shape index: {}]
  %s5 = inlined_call_operand.vmem [shape: f32[1,128], index: 5, kind: input, shape index: {}]
  %s6 = inlined_call_operand.hbm [shape: f32[8,128], index: 6, kind: output, shape index: {}]
  %s7 = sld [smem:[#allocation0]]
  $region50: #{tpu_custom_call.1} parent=0
    _
  %s9 = ssub.s32 1, %s7
  %s10 = scalar_select 0, %s9, %s7
  $region1: #{tpu_custom_call.1} parent=0
    #allocation3 [shape = 'u8[4096]{0}', space=vmem, size = 0x1000, scoped, tag = 'input window, operand 0, single buffered']
    #allocation4 [shape = 's32[1]{0}', space=sflag, size = 0x4, scoped, tag = 'scoped memory for tpu_custom_call.1']
    #allocation5 [shape = 's32[1]{0}', space=sflag, size = 0x4, scoped, tag = 'scoped memory for tpu_custom_call.1']
    #allocation6 [shape = 'u8[32768]{0}', space=vmem, size = 0x8000, scoped, tag = 'input window, operand 1, single buffered']
    #allocation7 [shape = 's32[1]{0}', space=sflag, size = 0x4, scoped, tag = 'scoped memory for tpu_custom_call.1']
    #allocation8 [shape = 'u8[262144]{0}', space=vmem, size = 0x40000, scoped, tag = 'input window, operand 2, single buffered']
    #allocation9 [shape = 'u8[65536]{0}', space=vmem, size = 0x10000, scoped, tag = 'input window, operand 4, single buffered']
    #allocation10 [shape = 's32[1]{0}', space=sflag, size = 0x4, scoped, tag = 'scoped memory for tpu_custom_call.1']
    #allocation11 [shape = 'u8[4096]{0}', space=vmem, size = 0x1000, scoped, tag = 'output window, operand 0, single buffered']
    %11 = vsyncpa [#allocation4], 0
    %12 = vsyncpa [#allocation7], 0
    %13 = vsyncpa [#allocation10], 0
    %14 = vsyncpa [#allocation5], 0
    // Predicated region
    $region2: #{tpu_custom_call.1} parent=1 // pred_check
      _
    $region3: #{tpu_custom_call.1} parent=1 // pred_check_branch
      %16 = sbr.rel (0) target = $region5
    $region4: #{tpu_custom_call.1} parent=1 // pred_region
      %s18 = ssub.s32 128, 128
      %19 = vsyncadd [#allocation4], %s18
      %s21 = sshll.u32 [#allocation3], 4
      %s22 = int_to_ptr.vmem [resolvable:$true] %s21
      %24 = dma.hbm_to_vmem [thread:$0]  %s0, 128, %s22, [#allocation4]
    $region5: #{tpu_custom_call.1} parent=1 // pred_fallthru
      _
    // Predicated region
    $region6: #{tpu_custom_call.1} parent=1 // pred_check
      _
    $region7: #{tpu_custom_call.1} parent=1 // pred_check_branch
      %26 = sbr.rel (0) target = $region9
    $region8: #{tpu_custom_call.1} parent=1 // pred_region
      %s28 = ssub.s32 1024, 1024
      %29 = vsyncadd [#allocation7], %s28
      %s30 = sshll.u32 [#allocation6], 4
      %s31 = int_to_ptr.vmem [resolvable:$true] %s30
      %36 = dma.hbm_to_vmem [thread:$0]  %s1, 1024, %s31, [#allocation7], 512, 512, 32
    $region9: #{tpu_custom_call.1} parent=1 // pred_fallthru
      _
    // Predicated region
    $region10: #{tpu_custom_call.1} parent=1 // pred_check
      _
    $region11: #{tpu_custom_call.1} parent=1 // pred_check_branch
      %38 = sbr.rel (0) target = $region13
    $region12: #{tpu_custom_call.1} parent=1 // pred_region
      %s40 = ssub.s32 8192, 8192
      %41 = vsyncadd [#allocation7], %s40
      %s42 = sshll.u32 [#allocation8], 4
      %s43 = int_to_ptr.vmem [resolvable:$true] %s42
      %48 = dma.hbm_to_vmem [thread:$0]  %s2, 8192, %s43, [#allocation7], 512, 512, 32
    $region13: #{tpu_custom_call.1} parent=1 // pred_fallthru
      _
    // Predicated region
    $region14: #{tpu_custom_call.1} parent=1 // pred_check
      _
    $region15: #{tpu_custom_call.1} parent=1 // pred_check_branch
      %50 = sbr.rel (0) target = $region17
    $region16: #{tpu_custom_call.1} parent=1 // pred_region
      _
    $region17: #{tpu_custom_call.1} parent=1 // pred_fallthru
      _
    // Predicated region
    $region18: #{tpu_custom_call.1} parent=1 // pred_check
      _
    $region19: #{tpu_custom_call.1} parent=1 // pred_check_branch
      %52 = sbr.rel (0) target = $region21
    $region20: #{tpu_custom_call.1} parent=1 // pred_region
      %s54 = ssub.s32 2048, 2048
      %55 = vsyncadd [#allocation10], %s54
      %s56 = sshll.u32 [#allocation9], 4
      %s57 = int_to_ptr.vmem [resolvable:$true] %s56
      %62 = dma.hbm_to_vmem [thread:$0]  %s4, 2048, %s57, [#allocation10], 128, 128, 8
    $region21: #{tpu_custom_call.1} parent=1 // pred_fallthru
      _
    // Predicated region
    $region22: #{tpu_custom_call.1} parent=1 // pred_check
      _
    $region23: #{tpu_custom_call.1} parent=1 // pred_check_branch
      %64 = sbr.rel (0) target = $region25
    $region24: #{tpu_custom_call.1} parent=1 // pred_region
      _
    $region25: #{tpu_custom_call.1} parent=1 // pred_fallthru
      _
    // Predicated region
    $region26: #{tpu_custom_call.1} parent=1 // pred_check
      _
    $region27: #{tpu_custom_call.1} parent=1 // pred_check_branch
      %66 = sbr.rel (0) target = $region29
    $region28: #{tpu_custom_call.1} parent=1 // pred_region
      %67 = dma.done [#allocation4], 128
    $region29: #{tpu_custom_call.1} parent=1 // pred_fallthru
      _
    // Predicated region
    $region30: #{tpu_custom_call.1} parent=1 // pred_check
      _
    $region31: #{tpu_custom_call.1} parent=1 // pred_check_branch
      %69 = sbr.rel (0) target = $region33
    $region32: #{tpu_custom_call.1} parent=1 // pred_region
      %70 = dma.done [#allocation7], 1024
    $region33: #{tpu_custom_call.1} parent=1 // pred_fallthru
      _
    // Predicated region
    $region34: #{tpu_custom_call.1} parent=1 // pred_check
      _
    $region35: #{tpu_custom_call.1} parent=1 // pred_check_branch
      %72 = sbr.rel (0) target = $region37
    $region36: #{tpu_custom_call.1} parent=1 // pred_region
      %73 = dma.done [#allocation7], 8192
    $region37: #{tpu_custom_call.1} parent=1 // pred_fallthru
      _
    // Predicated region
    $region38: #{tpu_custom_call.1} parent=1 // pred_check
      _
    $region39: #{tpu_custom_call.1} parent=1 // pred_check_branch
      %75 = sbr.rel (0) target = $region41
    $region40: #{tpu_custom_call.1} parent=1 // pred_region
      %76 = dma.done [#allocation10], 2048
    $region41: #{tpu_custom_call.1} parent=1 // pred_fallthru
      _
    %v77 = vld [vmem:[#allocation3] sm:$0xff]
    %v78 = vld [vmem:[#allocation6] sm:$0xff]
    %v79 = vld [vmem:[#allocation6 + $0x8] sm:$0xff]
    %v80 = vld [vmem:[#allocation6 + $0x10] sm:$0xff]
    %v81 = vld [vmem:[#allocation6 + $0x18] sm:$0xff]
    %v82 = vld [vmem:[#allocation6 + $0x20] sm:$0xff]
    %v83 = vld [vmem:[#allocation6 + $0x28] sm:$0xff]
    %v84 = vld [vmem:[#allocation6 + $0x30] sm:$0xff]
    %v85 = vld [vmem:[#allocation6 + $0x38] sm:$0xff]
    %v86 = vld [vmem:[%s3] sm:$0xf]
    %v88 = vlaneseq
    %v89 = vshrl.u32 %v88, 7
    %v90 = vsub.s32 0, %v89
    %v91 = vrot.slane %v86, %v90
    %v92 = vlaneseq
    %v93 = vshrl.u32 %v92, 7
    %v94 = vsub.s32 1, %v93
    %v95 = vrot.slane %v86, %v94
    %v96 = vlaneseq
    %v97 = vshrl.u32 %v96, 7
    %v98 = vsub.s32 2, %v97
    %v99 = vrot.slane %v86, %v98
    %v100 = vlaneseq
    %v101 = vshrl.u32 %v100, 7
    %v102 = vsub.s32 3, %v101
    %v103 = vrot.slane %v86, %v102
    %vm108 = vcmask 130048
    %v110 = vsel %vm108, %v77, 0
    %112 = vmatprep.subr.mxu0 0.0
    %113 = vmatpush1.msra.mxu0 0.0
    %114 = vmatprep.subr.mxu0 0.0
    %115 = vmatpush1.msra.mxu0 0.0
    %116 = vmatprep.subr.mxu0 0.0
    %117 = vmatpush1.msra.mxu0 0.0
    %118 = vmatprep.subr.mxu0 0.0
    %119 = vmatpush1.msra.mxu0 0.0
    %120 = vmatprep.subr.mxu0 0.0
    %121 = vmatpush1.msra.mxu0 0.0
    %122 = vmatprep.subr.mxu0 0.0
    %123 = vmatpush1.msra.mxu0 0.0
    %124 = vmatprep.subr.mxu0 0.0
    %125 = vmatpush1.msra.mxu0 0.0
    %126 = vmatprep.subr.mxu0 0.0
    %127 = vmatpush1.msra.mxu0 0.0
    %128 = vmatprep.subr.mxu0 0.0
    %129 = vmatpush1.msra.mxu0 0.0
    %130 = vmatprep.subr.mxu0 0.0
    %131 = vmatpush1.msra.mxu0 0.0
    %132 = vmatprep.subr.mxu0 0.0
    %133 = vmatpush1.msra.mxu0 0.0
    %134 = vmatprep.subr.mxu0 0.0
    %135 = vmatpush1.msra.mxu0 0.0
    %136 = vmatprep.subr.mxu0 0.0
    %137 = vmatpush1.msra.mxu0 0.0
    %138 = vmatprep.subr.mxu0 0.0
    %139 = vmatpush1.msra.mxu0 0.0
    %140 = vmatprep.subr.mxu0 %v83
    %141 = vmatpush1.msra.mxu0 %v82
    %142 = vmatprep.subr.mxu0 %v79
    %143 = vmatpush1.msra.mxu0 %v78
    %144 = vmatprep.subr.mxu0 0.0
    %145 = vmatpush2.msra.mxu0 0.0
    %146 = vmatprep.subr.mxu0 0.0
    %147 = vmatpush2.msra.mxu0 0.0
    %148 = vmatprep.subr.mxu0 0.0
    %149 = vmatpush2.msra.mxu0 0.0
    %150 = vmatprep.subr.mxu0 0.0
    %151 = vmatpush2.msra.mxu0 0.0
    %152 = vmatprep.subr.mxu0 0.0
    %153 = vmatpush2.msra.mxu0 0.0
    %154 = vmatprep.subr.mxu0 0.0
    %155 = vmatpush2.msra.mxu0 0.0
    %156 = vmatprep.subr.mxu0 0.0
    %157 = vmatpush2.msra.mxu0 0.0
    %158 = vmatprep.subr.mxu0 0.0
    %159 = vmatpush2.msra.mxu0 0.0
    %160 = vmatprep.subr.mxu0 0.0
    %161 = vmatpush2.msra.mxu0 0.0
    %162 = vmatprep.subr.mxu0 0.0
    %163 = vmatpush2.msra.mxu0 0.0
    %164 = vmatprep.subr.mxu0 0.0
    %165 = vmatpush2.msra.mxu0 0.0
    %166 = vmatprep.subr.mxu0 0.0
    %167 = vmatpush2.msra.mxu0 0.0
    %168 = vmatprep.subr.mxu0 0.0
    %169 = vmatpush2.msra.mxu0 0.0
    %170 = vmatprep.subr.mxu0 0.0
    %171 = vmatpush2.msra.mxu0 0.0
    %172 = vmatprep.subr.mxu0 0.0
    %173 = vmatpush2.msra.mxu0 0.0
    %174 = vmatprep.subr.mxu0 0.0
    %175 = vmatpush2.msra.mxu0 0.0
    %176 = vmatprep.mubr.f32.mxu0 0.0
    %177 = vmatmul.mubr.f32.gmra.mxu0 %v110
    %v178 = vpop.f32.mrf.mxu0
    %v179 = vadd.f32 %v91, %v178
    %v180 = vpop.f32.mrf.mxu0
    %v181 = vadd.f32 %v95, %v180
    %182 = vdwg.mxu0
    %183 = vmatprep.subr.mxu0 0.0
    %184 = vmatpush1.msra.mxu0 0.0
    %185 = vmatprep.subr.mxu0 0.0
    %186 = vmatpush1.msra.mxu0 0.0
    %187 = vmatprep.subr.mxu0 0.0
    %188 = vmatpush1.msra.mxu0 0.0
    %189 = vmatprep.subr.mxu0 0.0
    %190 = vmatpush1.msra.mxu0 0.0
    %191 = vmatprep.subr.mxu0 0.0
    %192 = vmatpush1.msra.mxu0 0.0
    %193 = vmatprep.subr.mxu0 0.0
    %194 = vmatpush1.msra.mxu0 0.0
    %195 = vmatprep.subr.mxu0 0.0
    %196 = vmatpush1.msra.mxu0 0.0
    %197 = vmatprep.subr.mxu0 0.0
    %198 = vmatpush1.msra.mxu0 0.0
    %199 = vmatprep.subr.mxu0 0.0
    %200 = vmatpush1.msra.mxu0 0.0
    %201 = vmatprep.subr.mxu0 0.0
    %202 = vmatpush1.msra.mxu0 0.0
    %203 = vmatprep.subr.mxu0 0.0
    %204 = vmatpush1.msra.mxu0 0.0
    %205 = vmatprep.subr.mxu0 0.0
    %206 = vmatpush1.msra.mxu0 0.0
    %207 = vmatprep.subr.mxu0 0.0
    %208 = vmatpush1.msra.mxu0 0.0
    %209 = vmatprep.subr.mxu0 0.0
    %210 = vmatpush1.msra.mxu0 0.0
    %211 = vmatprep.subr.mxu0 %v85
    %212 = vmatpush1.msra.mxu0 %v84
    %213 = vmatprep.subr.mxu0 %v81
    %214 = vmatpush1.msra.mxu0 %v80
    %215 = vmatprep.subr.mxu0 0.0
    %216 = vmatpush2.msra.mxu0 0.0
    %217 = vmatprep.subr.mxu0 0.0
    %218 = vmatpush2.msra.mxu0 0.0
    %219 = vmatprep.subr.mxu0 0.0
    %220 = vmatpush2.msra.mxu0 0.0
    %221 = vmatprep.subr.mxu0 0.0
    %222 = vmatpush2.msra.mxu0 0.0
    %223 = vmatprep.subr.mxu0 0.0
    %224 = vmatpush2.msra.mxu0 0.0
    %225 = vmatprep.subr.mxu0 0.0
    %226 = vmatpush2.msra.mxu0 0.0
    %227 = vmatprep.subr.mxu0 0.0
    %228 = vmatpush2.msra.mxu0 0.0
    %229 = vmatprep.subr.mxu0 0.0
    %230 = vmatpush2.msra.mxu0 0.0
    %231 = vmatprep.subr.mxu0 0.0
    %232 = vmatpush2.msra.mxu0 0.0
    %233 = vmatprep.subr.mxu0 0.0
    %234 = vmatpush2.msra.mxu0 0.0
    %235 = vmatprep.subr.mxu0 0.0
    %236 = vmatpush2.msra.mxu0 0.0
    %237 = vmatprep.subr.mxu0 0.0
    %238 = vmatpush2.msra.mxu0 0.0
    %239 = vmatprep.subr.mxu0 0.0
    %240 = vmatpush2.msra.mxu0 0.0
    %241 = vmatprep.subr.mxu0 0.0
    %242 = vmatpush2.msra.mxu0 0.0
    %243 = vmatprep.subr.mxu0 0.0
    %244 = vmatpush2.msra.mxu0 0.0
    %245 = vmatprep.subr.mxu0 0.0
    %246 = vmatpush2.msra.mxu0 0.0
    %247 = vmatprep.mubr.f32.mxu0 0.0
    %248 = vmatmul.mubr.f32.gmra.mxu0 %v110
    %v249 = vpop.f32.mrf.mxu0
    %v250 = vadd.f32 %v99, %v249
    %v251 = vpop.f32.mrf.mxu0
    %v252 = vadd.f32 %v103, %v251
    %253 = vdwg.mxu0
    %v254 = vld [vmem:[#allocation8] sm:$0xff]
    %v255 = vld [vmem:[#allocation8 + $0x8] sm:$0xff]
    %v256 = vld [vmem:[#allocation8 + $0x10] sm:$0xff]
    %v257 = vld [vmem:[#allocation8 + $0x18] sm:$0xff]
    %v258 = vld [vmem:[#allocation8 + $0x20] sm:$0xff]
    %v259 = vld [vmem:[#allocation8 + $0x28] sm:$0xff]
    %v260 = vld [vmem:[#allocation8 + $0x30] sm:$0xff]
    %v261 = vld [vmem:[#allocation8 + $0x38] sm:$0xff]
    %v262 = vld [vmem:[#allocation8 + $0x40] sm:$0xff]
    %v263 = vld [vmem:[#allocation8 + $0x48] sm:$0xff]
    %v264 = vld [vmem:[#allocation8 + $0x50] sm:$0xff]
    %v265 = vld [vmem:[#allocation8 + $0x58] sm:$0xff]
    %v266 = vld [vmem:[#allocation8 + $0x60] sm:$0xff]
    %v267 = vld [vmem:[#allocation8 + $0x68] sm:$0xff]
    %v268 = vld [vmem:[#allocation8 + $0x70] sm:$0xff]
    %v269 = vld [vmem:[#allocation8 + $0x78] sm:$0xff]
    %v270 = vld [vmem:[#allocation8 + $0x80] sm:$0xff]
    %v271 = vld [vmem:[#allocation8 + $0x88] sm:$0xff]
    %v272 = vld [vmem:[#allocation8 + $0x90] sm:$0xff]
    %v273 = vld [vmem:[#allocation8 + $0x98] sm:$0xff]
    %v274 = vld [vmem:[#allocation8 + $0xa0] sm:$0xff]
    %v275 = vld [vmem:[#allocation8 + $0xa8] sm:$0xff]
    %v276 = vld [vmem:[#allocation8 + $0xb0] sm:$0xff]
    %v277 = vld [vmem:[#allocation8 + $0xb8] sm:$0xff]
    %v278 = vld [vmem:[#allocation8 + $0xc0] sm:$0xff]
    %v279 = vld [vmem:[#allocation8 + $0xc8] sm:$0xff]
    %v280 = vld [vmem:[#allocation8 + $0xd0] sm:$0xff]
    %v281 = vld [vmem:[#allocation8 + $0xd8] sm:$0xff]
    %v282 = vld [vmem:[#allocation8 + $0xe0] sm:$0xff]
    %v283 = vld [vmem:[#allocation8 + $0xe8] sm:$0xff]
    %v284 = vld [vmem:[#allocation8 + $0xf0] sm:$0xff]
    %v285 = vld [vmem:[#allocation8 + $0xf8] sm:$0xff]
    %v286 = vld [vmem:[#allocation8 + $0x100] sm:$0xff]
    %v287 = vld [vmem:[#allocation8 + $0x108] sm:$0xff]
    %v288 = vld [vmem:[#allocation8 + $0x110] sm:$0xff]
    %v289 = vld [vmem:[#allocation8 + $0x118] sm:$0xff]
    %v290 = vld [vmem:[#allocation8 + $0x120] sm:$0xff]
    %v291 = vld [vmem:[#allocation8 + $0x128] sm:$0xff]
    %v292 = vld [vmem:[#allocation8 + $0x130] sm:$0xff]
    %v293 = vld [vmem:[#allocation8 + $0x138] sm:$0xff]
    %v294 = vld [vmem:[#allocation8 + $0x140] sm:$0xff]
    %v295 = vld [vmem:[#allocation8 + $0x148] sm:$0xff]
    %v296 = vld [vmem:[#allocation8 + $0x150] sm:$0xff]
    %v297 = vld [vmem:[#allocation8 + $0x158] sm:$0xff]
    %v298 = vld [vmem:[#allocation8 + $0x160] sm:$0xff]
    %v299 = vld [vmem:[#allocation8 + $0x168] sm:$0xff]
    %v300 = vld [vmem:[#allocation8 + $0x170] sm:$0xff]
    %v301 = vld [vmem:[#allocation8 + $0x178] sm:$0xff]
    %v302 = vld [vmem:[#allocation8 + $0x180] sm:$0xff]
    %v303 = vld [vmem:[#allocation8 + $0x188] sm:$0xff]
    %v304 = vld [vmem:[#allocation8 + $0x190] sm:$0xff]
    %v305 = vld [vmem:[#allocation8 + $0x198] sm:$0xff]
    %v306 = vld [vmem:[#allocation8 + $0x1a0] sm:$0xff]
    %v307 = vld [vmem:[#allocation8 + $0x1a8] sm:$0xff]
    %v308 = vld [vmem:[#allocation8 + $0x1b0] sm:$0xff]
    %v309 = vld [vmem:[#allocation8 + $0x1b8] sm:$0xff]
    %v310 = vld [vmem:[#allocation8 + $0x1c0] sm:$0xff]
    %v311 = vld [vmem:[#allocation8 + $0x1c8] sm:$0xff]
    %v312 = vld [vmem:[#allocation8 + $0x1d0] sm:$0xff]
    %v313 = vld [vmem:[#allocation8 + $0x1d8] sm:$0xff]
    %v314 = vld [vmem:[#allocation8 + $0x1e0] sm:$0xff]
    %v315 = vld [vmem:[#allocation8 + $0x1e8] sm:$0xff]
    %v316 = vld [vmem:[#allocation8 + $0x1f0] sm:$0xff]
    %v317 = vld [vmem:[#allocation8 + $0x1f8] sm:$0xff]
    %318 = vmatprep.subr.mxu0 %v315
    %319 = vmatpush1.msra.mxu0 %v314
    %320 = vmatprep.subr.mxu0 %v311
    %321 = vmatpush1.msra.mxu0 %v310
    %322 = vmatprep.subr.mxu0 %v307
    %323 = vmatpush1.msra.mxu0 %v306
    %324 = vmatprep.subr.mxu0 %v303
    %325 = vmatpush1.msra.mxu0 %v302
    %326 = vmatprep.subr.mxu0 %v299
    %327 = vmatpush1.msra.mxu0 %v298
    %328 = vmatprep.subr.mxu0 %v295
    %329 = vmatpush1.msra.mxu0 %v294
    %330 = vmatprep.subr.mxu0 %v291
    %331 = vmatpush1.msra.mxu0 %v290
    %332 = vmatprep.subr.mxu0 %v287
    %333 = vmatpush1.msra.mxu0 %v286
    %334 = vmatprep.subr.mxu0 %v283
    %335 = vmatpush1.msra.mxu0 %v282
    %336 = vmatprep.subr.mxu0 %v279
    %337 = vmatpush1.msra.mxu0 %v278
    %338 = vmatprep.subr.mxu0 %v275
    %339 = vmatpush1.msra.mxu0 %v274
    %340 = vmatprep.subr.mxu0 %v271
    %341 = vmatpush1.msra.mxu0 %v270
    %342 = vmatprep.subr.mxu0 %v267
    %343 = vmatpush1.msra.mxu0 %v266
    %344 = vmatprep.subr.mxu0 %v263
    %345 = vmatpush1.msra.mxu0 %v262
    %346 = vmatprep.subr.mxu0 %v259
    %347 = vmatpush1.msra.mxu0 %v258
    %348 = vmatprep.subr.mxu0 %v255
    %349 = vmatpush1.msra.mxu0 %v254
    %350 = vmatprep.subr.mxu0 0.0
    %351 = vmatpush2.msra.mxu0 0.0
    %352 = vmatprep.subr.mxu0 0.0
    %353 = vmatpush2.msra.mxu0 0.0
    %354 = vmatprep.subr.mxu0 0.0
    %355 = vmatpush2.msra.mxu0 0.0
    %356 = vmatprep.subr.mxu0 0.0
    %357 = vmatpush2.msra.mxu0 0.0
    %358 = vmatprep.subr.mxu0 0.0
    %359 = vmatpush2.msra.mxu0 0.0
    %360 = vmatprep.subr.mxu0 0.0
    %361 = vmatpush2.msra.mxu0 0.0
    %362 = vmatprep.subr.mxu0 0.0
    %363 = vmatpush2.msra.mxu0 0.0
    %364 = vmatprep.subr.mxu0 0.0
    %365 = vmatpush2.msra.mxu0 0.0
    %366 = vmatprep.subr.mxu0 0.0
    %367 = vmatpush2.msra.mxu0 0.0
    %368 = vmatprep.subr.mxu0 0.0
    %369 = vmatpush2.msra.mxu0 0.0
    %370 = vmatprep.subr.mxu0 0.0
    %371 = vmatpush2.msra.mxu0 0.0
    %372 = vmatprep.subr.mxu0 0.0
    %373 = vmatpush2.msra.mxu0 0.0
    %374 = vmatprep.subr.mxu0 0.0
    %375 = vmatpush2.msra.mxu0 0.0
    %376 = vmatprep.subr.mxu0 0.0
    %377 = vmatpush2.msra.mxu0 0.0
    %378 = vmatprep.subr.mxu0 0.0
    %379 = vmatpush2.msra.mxu0 0.0
    %380 = vmatprep.subr.mxu0 0.0
    %381 = vmatpush2.msra.mxu0 0.0
    %382 = vmatprep.mubr.f32.mxu0 0.0
    %383 = vmatmul.mubr.f32.gmra.mxu0 0.0
    %v384 = vpop.f32.mrf.mxu0
    %v385 = vadd.f32 0.0, %v384
    %v386 = vpop.f32.mrf.mxu0
    %v387 = vadd.f32 0.0, %v386
    %388 = vdwg.mxu0
    %389 = vmatprep.subr.mxu0 %v317
    %390 = vmatpush1.msra.mxu0 %v316
    %391 = vmatprep.subr.mxu0 %v313
    %392 = vmatpush1.msra.mxu0 %v312
    %393 = vmatprep.subr.mxu0 %v309
    %394 = vmatpush1.msra.mxu0 %v308
    %395 = vmatprep.subr.mxu0 %v305
    %396 = vmatpush1.msra.mxu0 %v304
    %397 = vmatprep.subr.mxu0 %v301
    %398 = vmatpush1.msra.mxu0 %v300
    %399 = vmatprep.subr.mxu0 %v297
    %400 = vmatpush1.msra.mxu0 %v296
    %401 = vmatprep.subr.mxu0 %v293
    %402 = vmatpush1.msra.mxu0 %v292
    %403 = vmatprep.subr.mxu0 %v289
    %404 = vmatpush1.msra.mxu0 %v288
    %405 = vmatprep.subr.mxu0 %v285
    %406 = vmatpush1.msra.mxu0 %v284
    %407 = vmatprep.subr.mxu0 %v281
    %408 = vmatpush1.msra.mxu0 %v280
    %409 = vmatprep.subr.mxu0 %v277
    %410 = vmatpush1.msra.mxu0 %v276
    %411 = vmatprep.subr.mxu0 %v273
    %412 = vmatpush1.msra.mxu0 %v272
    %413 = vmatprep.subr.mxu0 %v269
    %414 = vmatpush1.msra.mxu0 %v268
    %415 = vmatprep.subr.mxu0 %v265
    %416 = vmatpush1.msra.mxu0 %v264
    %417 = vmatprep.subr.mxu0 %v261
    %418 = vmatpush1.msra.mxu0 %v260
    %419 = vmatprep.subr.mxu0 %v257
    %420 = vmatpush1.msra.mxu0 %v256
    %421 = vmatprep.subr.mxu0 0.0
    %422 = vmatpush2.msra.mxu0 0.0
    %423 = vmatprep.subr.mxu0 0.0
    %424 = vmatpush2.msra.mxu0 0.0
    %425 = vmatprep.subr.mxu0 0.0
    %426 = vmatpush2.msra.mxu0 0.0
    %427 = vmatprep.subr.mxu0 0.0
    %428 = vmatpush2.msra.mxu0 0.0
    %429 = vmatprep.subr.mxu0 0.0
    %430 = vmatpush2.msra.mxu0 0.0
    %431 = vmatprep.subr.mxu0 0.0
    %432 = vmatpush2.msra.mxu0 0.0
    %433 = vmatprep.subr.mxu0 0.0
    %434 = vmatpush2.msra.mxu0 0.0
    %435 = vmatprep.subr.mxu0 0.0
    %436 = vmatpush2.msra.mxu0 0.0
    %437 = vmatprep.subr.mxu0 0.0
    %438 = vmatpush2.msra.mxu0 0.0
    %439 = vmatprep.subr.mxu0 0.0
    %440 = vmatpush2.msra.mxu0 0.0
    %441 = vmatprep.subr.mxu0 0.0
    %442 = vmatpush2.msra.mxu0 0.0
    %443 = vmatprep.subr.mxu0 0.0
    %444 = vmatpush2.msra.mxu0 0.0
    %445 = vmatprep.subr.mxu0 0.0
    %446 = vmatpush2.msra.mxu0 0.0
    %447 = vmatprep.subr.mxu0 0.0
    %448 = vmatpush2.msra.mxu0 0.0
    %449 = vmatprep.subr.mxu0 0.0
    %450 = vmatpush2.msra.mxu0 0.0
    %451 = vmatprep.subr.mxu0 0.0
    %452 = vmatpush2.msra.mxu0 0.0
    %453 = vmatprep.mubr.f32.mxu0 0.0
    %454 = vmatmul.mubr.f32.gmra.mxu0 0.0
    %v455 = vpop.f32.mrf.mxu0
    %v456 = vadd.f32 0.0, %v455
    %v457 = vpop.f32.mrf.mxu0
    %v458 = vadd.f32 0.0, %v457
    %459 = vdwg.mxu0
    %v460 = vadd.f32 %v179, %v385
    %v461 = vadd.f32 %v181, %v387
    %v462 = vadd.f32 %v250, %v456
    %v463 = vadd.f32 %v252, %v458
    %v464 = vxor.u32 %v460, 2147483648
    %v465 = vmul.f32 %v464, 1.442695
    %v466 = vpow.pop %v465
    %v467 = vadd.f32 %v466, 1.0
    %v468 = vrcp.pop %v467
    %v469 = vmul.f32 1.0, %v468
    %v470 = vxor.u32 %v461, 2147483648
    %v471 = vmul.f32 %v470, 1.442695
    %v472 = vpow.pop %v471
    %v473 = vadd.f32 %v472, 1.0
    %v474 = vrcp.pop %v473
    %v475 = vmul.f32 1.0, %v474
    %v476 = vtanh.pop %v462
    %v477 = vxor.u32 %v463, 2147483648
    %v478 = vmul.f32 %v477, 1.442695
    %v479 = vpow.pop %v478
    %v480 = vadd.f32 %v479, 1.0
    %v481 = vrcp.pop %v480
    %v482 = vmul.f32 1.0, %v481
    %v483 = vmul.f32 %v475, 0.0
    %v484 = vmul.f32 %v469, %v476
    %v485 = vadd.f32 %v483, %v484
    %v486 = vtanh.pop %v485
    %v487 = vmul.f32 %v482, %v486
    %488 = vst [vmem:[#allocation2] sm:$0x1] %v487
    %489 = vmatprep.subr.mxu0 %v315
    %490 = vmatpush1.msra.mxu0 %v314
    %491 = vmatprep.subr.mxu0 %v311
    %492 = vmatpush1.msra.mxu0 %v310
    %493 = vmatprep.subr.mxu0 %v307
    %494 = vmatpush1.msra.mxu0 %v306
    %495 = vmatprep.subr.mxu0 %v303
    %496 = vmatpush1.msra.mxu0 %v302
    %497 = vmatprep.subr.mxu0 %v299
    %498 = vmatpush1.msra.mxu0 %v298
    %499 = vmatprep.subr.mxu0 %v295
    %500 = vmatpush1.msra.mxu0 %v294
    %501 = vmatprep.subr.mxu0 %v291
    %502 = vmatpush1.msra.mxu0 %v290
    %503 = vmatprep.subr.mxu0 %v287
    %504 = vmatpush1.msra.mxu0 %v286
    %505 = vmatprep.subr.mxu0 %v283
    %506 = vmatpush1.msra.mxu0 %v282
    %507 = vmatprep.subr.mxu0 %v279
    %508 = vmatpush1.msra.mxu0 %v278
    %509 = vmatprep.subr.mxu0 %v275
    %510 = vmatpush1.msra.mxu0 %v274
    %511 = vmatprep.subr.mxu0 %v271
    %512 = vmatpush1.msra.mxu0 %v270
    %513 = vmatprep.subr.mxu0 %v267
    %514 = vmatpush1.msra.mxu0 %v266
    %515 = vmatprep.subr.mxu0 %v263
    %516 = vmatpush1.msra.mxu0 %v262
    %517 = vmatprep.subr.mxu0 %v259
    %518 = vmatpush1.msra.mxu0 %v258
    %519 = vmatprep.subr.mxu0 %v255
    %520 = vmatpush1.msra.mxu0 %v254
    %521 = vmatprep.subr.mxu0 0.0
    %522 = vmatpush2.msra.mxu0 0.0
    %523 = vmatprep.subr.mxu0 0.0
    %524 = vmatpush2.msra.mxu0 0.0
    %525 = vmatprep.subr.mxu0 0.0
    %526 = vmatpush2.msra.mxu0 0.0
    %527 = vmatprep.subr.mxu0 0.0
    %528 = vmatpush2.msra.mxu0 0.0
    %529 = vmatprep.subr.mxu0 0.0
    %530 = vmatpush2.msra.mxu0 0.0
    %531 = vmatprep.subr.mxu0 0.0
    %532 = vmatpush2.msra.mxu0 0.0
    %533 = vmatprep.subr.mxu0 0.0
    %534 = vmatpush2.msra.mxu0 0.0
    %535 = vmatprep.subr.mxu0 0.0
    %536 = vmatpush2.msra.mxu0 0.0
    %537 = vmatprep.subr.mxu0 0.0
    %538 = vmatpush2.msra.mxu0 0.0
    %539 = vmatprep.subr.mxu0 0.0
    %540 = vmatpush2.msra.mxu0 0.0
    %541 = vmatprep.subr.mxu0 0.0
    %542 = vmatpush2.msra.mxu0 0.0
    %543 = vmatprep.subr.mxu0 0.0
    %544 = vmatpush2.msra.mxu0 0.0
    %545 = vmatprep.subr.mxu0 0.0
    %546 = vmatpush2.msra.mxu0 0.0
    %547 = vmatprep.subr.mxu0 0.0
    %548 = vmatpush2.msra.mxu0 0.0
    %549 = vmatprep.subr.mxu0 0.0
    %550 = vmatpush2.msra.mxu0 0.0
    %551 = vmatprep.subr.mxu0 0.0
    %552 = vmatpush2.msra.mxu0 0.0
    %553 = vmatprep.mubr.f32.mxu0 0.0
    %554 = vmatmul.mubr.f32.gmra.mxu0 %v487
    %v555 = vpop.f32.mrf.mxu0
    %v556 = vadd.f32 0.0, %v555
    %v557 = vpop.f32.mrf.mxu0
    %v558 = vadd.f32 0.0, %v557
    %559 = vdwg.mxu0
    %560 = vmatprep.subr.mxu0 %v317
    %561 = vmatpush1.msra.mxu0 %v316
    %562 = vmatprep.subr.mxu0 %v313
    %563 = vmatpush1.msra.mxu0 %v312
    %564 = vmatprep.subr.mxu0 %v309
    %565 = vmatpush1.msra.mxu0 %v308
    %566 = vmatprep.subr.mxu0 %v305
    %567 = vmatpush1.msra.mxu0 %v304
    %568 = vmatprep.subr.mxu0 %v301
    %569 = vmatpush1.msra.mxu0 %v300
    %570 = vmatprep.subr.mxu0 %v297
    %571 = vmatpush1.msra.mxu0 %v296
    %572 = vmatprep.subr.mxu0 %v293
    %573 = vmatpush1.msra.mxu0 %v292
    %574 = vmatprep.subr.mxu0 %v289
    %575 = vmatpush1.msra.mxu0 %v288
    %576 = vmatprep.subr.mxu0 %v285
    %577 = vmatpush1.msra.mxu0 %v284
    %578 = vmatprep.subr.mxu0 %v281
    %579 = vmatpush1.msra.mxu0 %v280
    %580 = vmatprep.subr.mxu0 %v277
    %581 = vmatpush1.msra.mxu0 %v276
    %582 = vmatprep.subr.mxu0 %v273
    %583 = vmatpush1.msra.mxu0 %v272
    %584 = vmatprep.subr.mxu0 %v269
    %585 = vmatpush1.msra.mxu0 %v268
    %586 = vmatprep.subr.mxu0 %v265
    %587 = vmatpush1.msra.mxu0 %v264
    %588 = vmatprep.subr.mxu0 %v261
    %589 = vmatpush1.msra.mxu0 %v260
    %590 = vmatprep.subr.mxu0 %v257
    %591 = vmatpush1.msra.mxu0 %v256
    %592 = vmatprep.subr.mxu0 0.0
    %593 = vmatpush2.msra.mxu0 0.0
    %594 = vmatprep.subr.mxu0 0.0
    %595 = vmatpush2.msra.mxu0 0.0
    %596 = vmatprep.subr.mxu0 0.0
    %597 = vmatpush2.msra.mxu0 0.0
    %598 = vmatprep.subr.mxu0 0.0
    %599 = vmatpush2.msra.mxu0 0.0
    %600 = vmatprep.subr.mxu0 0.0
    %601 = vmatpush2.msra.mxu0 0.0
    %602 = vmatprep.subr.mxu0 0.0
    %603 = vmatpush2.msra.mxu0 0.0
    %604 = vmatprep.subr.mxu0 0.0
    %605 = vmatpush2.msra.mxu0 0.0
    %606 = vmatprep.subr.mxu0 0.0
    %607 = vmatpush2.msra.mxu0 0.0
    %608 = vmatprep.subr.mxu0 0.0
    %609 = vmatpush2.msra.mxu0 0.0
    %610 = vmatprep.subr.mxu0 0.0
    %611 = vmatpush2.msra.mxu0 0.0
    %612 = vmatprep.subr.mxu0 0.0
    %613 = vmatpush2.msra.mxu0 0.0
    %614 = vmatprep.subr.mxu0 0.0
    %615 = vmatpush2.msra.mxu0 0.0
    %616 = vmatprep.subr.mxu0 0.0
    %617 = vmatpush2.msra.mxu0 0.0
    %618 = vmatprep.subr.mxu0 0.0
    %619 = vmatpush2.msra.mxu0 0.0
    %620 = vmatprep.subr.mxu0 0.0
    %621 = vmatpush2.msra.mxu0 0.0
    %622 = vmatprep.subr.mxu0 0.0
    %623 = vmatpush2.msra.mxu0 0.0
    %624 = vmatprep.mubr.f32.mxu0 0.0
    %625 = vmatmul.mubr.f32.gmra.mxu0 %v487
    %v626 = vpop.f32.mrf.mxu0
    %v627 = vadd.f32 0.0, %v626
    %v628 = vpop.f32.mrf.mxu0
    %v629 = vadd.f32 0.0, %v628
    %630 = vdwg.mxu0
    %v635 = vrot.slane %v556, 7
    %v636 = vrot.slane %v558, 7
    %v637 = vrot.slane %v627, 7
    %v638 = vrot.slane %v629, 7
    %v643 = vadd.f32 %v179, %v635
    %v644 = vadd.f32 %v181, %v636
    %v645 = vadd.f32 %v250, %v637
    %v646 = vadd.f32 %v252, %v638
    %v647 = vxor.u32 %v643, 2147483648
    %v648 = vmul.f32 %v647, 1.442695
    %v649 = vpow.pop %v648
    %v650 = vadd.f32 %v649, 1.0
    %v651 = vrcp.pop %v650
    %v652 = vmul.f32 1.0, %v651
    %v653 = vxor.u32 %v644, 2147483648
    %v654 = vmul.f32 %v653, 1.442695
    %v655 = vpow.pop %v654
    %v656 = vadd.f32 %v655, 1.0
    %v657 = vrcp.pop %v656
    %v658 = vmul.f32 1.0, %v657
    %v659 = vtanh.pop %v645
    %v660 = vxor.u32 %v646, 2147483648
    %v661 = vmul.f32 %v660, 1.442695
    %v662 = vpow.pop %v661
    %v663 = vadd.f32 %v662, 1.0
    %v664 = vrcp.pop %v663
    %v665 = vmul.f32 1.0, %v664
    %v667 = vrot.slane %v485, 7
    %v669 = vmul.f32 %v658, %v667
    %v670 = vmul.f32 %v652, %v659
    %v671 = vadd.f32 %v669, %v670
    %v672 = vtanh.pop %v671
    %v673 = vmul.f32 %v665, %v672
    %674 = vst [vmem:[#allocation2] sm:$0x2] %v673
    %v676 = vrot.slane %v673, 1
    %678 = vmatprep.subr.mxu0 %v315
    %679 = vmatpush1.msra.mxu0 %v314
    %680 = vmatprep.subr.mxu0 %v311
    %681 = vmatpush1.msra.mxu0 %v310
    %682 = vmatprep.subr.mxu0 %v307
    %683 = vmatpush1.msra.mxu0 %v306
    %684 = vmatprep.subr.mxu0 %v303
    %685 = vmatpush1.msra.mxu0 %v302
    %686 = vmatprep.subr.mxu0 %v299
    %687 = vmatpush1.msra.mxu0 %v298
    %688 = vmatprep.subr.mxu0 %v295
    %689 = vmatpush1.msra.mxu0 %v294
    %690 = vmatprep.subr.mxu0 %v291
    %691 = vmatpush1.msra.mxu0 %v290
    %692 = vmatprep.subr.mxu0 %v287
    %693 = vmatpush1.msra.mxu0 %v286
    %694 = vmatprep.subr.mxu0 %v283
    %695 = vmatpush1.msra.mxu0 %v282
    %696 = vmatprep.subr.mxu0 %v279
    %697 = vmatpush1.msra.mxu0 %v278
    %698 = vmatprep.subr.mxu0 %v275
    %699 = vmatpush1.msra.mxu0 %v274
    %700 = vmatprep.subr.mxu0 %v271
    %701 = vmatpush1.msra.mxu0 %v270
    %702 = vmatprep.subr.mxu0 %v267
    %703 = vmatpush1.msra.mxu0 %v266
    %704 = vmatprep.subr.mxu0 %v263
    %705 = vmatpush1.msra.mxu0 %v262
    %706 = vmatprep.subr.mxu0 %v259
    %707 = vmatpush1.msra.mxu0 %v258
    %708 = vmatprep.subr.mxu0 %v255
    %709 = vmatpush1.msra.mxu0 %v254
    %710 = vmatprep.subr.mxu0 0.0
    %711 = vmatpush2.msra.mxu0 0.0
    %712 = vmatprep.subr.mxu0 0.0
    %713 = vmatpush2.msra.mxu0 0.0
    %714 = vmatprep.subr.mxu0 0.0
    %715 = vmatpush2.msra.mxu0 0.0
    %716 = vmatprep.subr.mxu0 0.0
    %717 = vmatpush2.msra.mxu0 0.0
    %718 = vmatprep.subr.mxu0 0.0
    %719 = vmatpush2.msra.mxu0 0.0
    %720 = vmatprep.subr.mxu0 0.0
    %721 = vmatpush2.msra.mxu0 0.0
    %722 = vmatprep.subr.mxu0 0.0
    %723 = vmatpush2.msra.mxu0 0.0
    %724 = vmatprep.subr.mxu0 0.0
    %725 = vmatpush2.msra.mxu0 0.0
    %726 = vmatprep.subr.mxu0 0.0
    %727 = vmatpush2.msra.mxu0 0.0
    %728 = vmatprep.subr.mxu0 0.0
    %729 = vmatpush2.msra.mxu0 0.0
    %730 = vmatprep.subr.mxu0 0.0
    %731 = vmatpush2.msra.mxu0 0.0
    %732 = vmatprep.subr.mxu0 0.0
    %733 = vmatpush2.msra.mxu0 0.0
    %734 = vmatprep.subr.mxu0 0.0
    %735 = vmatpush2.msra.mxu0 0.0
    %736 = vmatprep.subr.mxu0 0.0
    %737 = vmatpush2.msra.mxu0 0.0
    %738 = vmatprep.subr.mxu0 0.0
    %739 = vmatpush2.msra.mxu0 0.0
    %740 = vmatprep.subr.mxu0 0.0
    %741 = vmatpush2.msra.mxu0 0.0
    %742 = vmatprep.mubr.f32.mxu0 0.0
    %743 = vmatmul.mubr.f32.gmra.mxu0 %v676
    %v744 = vpop.f32.mrf.mxu0
    %v745 = vadd.f32 0.0, %v744
    %v746 = vpop.f32.mrf.mxu0
    %v747 = vadd.f32 0.0, %v746
    %748 = vdwg.mxu0
    %749 = vmatprep.subr.mxu0 %v317
    %750 = vmatpush1.msra.mxu0 %v316
    %751 = vmatprep.subr.mxu0 %v313
    %752 = vmatpush1.msra.mxu0 %v312
    %753 = vmatprep.subr.mxu0 %v309
    %754 = vmatpush1.msra.mxu0 %v308
    %755 = vmatprep.subr.mxu0 %v305
    %756 = vmatpush1.msra.mxu0 %v304
    %757 = vmatprep.subr.mxu0 %v301
    %758 = vmatpush1.msra.mxu0 %v300
    %759 = vmatprep.subr.mxu0 %v297
    %760 = vmatpush1.msra.mxu0 %v296
    %761 = vmatprep.subr.mxu0 %v293
    %762 = vmatpush1.msra.mxu0 %v292
    %763 = vmatprep.subr.mxu0 %v289
    %764 = vmatpush1.msra.mxu0 %v288
    %765 = vmatprep.subr.mxu0 %v285
    %766 = vmatpush1.msra.mxu0 %v284
    %767 = vmatprep.subr.mxu0 %v281
    %768 = vmatpush1.msra.mxu0 %v280
    %769 = vmatprep.subr.mxu0 %v277
    %770 = vmatpush1.msra.mxu0 %v276
    %771 = vmatprep.subr.mxu0 %v273
    %772 = vmatpush1.msra.mxu0 %v272
    %773 = vmatprep.subr.mxu0 %v269
    %774 = vmatpush1.msra.mxu0 %v268
    %775 = vmatprep.subr.mxu0 %v265
    %776 = vmatpush1.msra.mxu0 %v264
    %777 = vmatprep.subr.mxu0 %v261
    %778 = vmatpush1.msra.mxu0 %v260
    %779 = vmatprep.subr.mxu0 %v257
    %780 = vmatpush1.msra.mxu0 %v256
    %781 = vmatprep.subr.mxu0 0.0
    %782 = vmatpush2.msra.mxu0 0.0
    %783 = vmatprep.subr.mxu0 0.0
    %784 = vmatpush2.msra.mxu0 0.0
    %785 = vmatprep.subr.mxu0 0.0
    %786 = vmatpush2.msra.mxu0 0.0
    %787 = vmatprep.subr.mxu0 0.0
    %788 = vmatpush2.msra.mxu0 0.0
    %789 = vmatprep.subr.mxu0 0.0
    %790 = vmatpush2.msra.mxu0 0.0
    %791 = vmatprep.subr.mxu0 0.0
    %792 = vmatpush2.msra.mxu0 0.0
    %793 = vmatprep.subr.mxu0 0.0
    %794 = vmatpush2.msra.mxu0 0.0
    %795 = vmatprep.subr.mxu0 0.0
    %796 = vmatpush2.msra.mxu0 0.0
    %797 = vmatprep.subr.mxu0 0.0
    %798 = vmatpush2.msra.mxu0 0.0
    %799 = vmatprep.subr.mxu0 0.0
    %800 = vmatpush2.msra.mxu0 0.0
    %801 = vmatprep.subr.mxu0 0.0
    %802 = vmatpush2.msra.mxu0 0.0
    %803 = vmatprep.subr.mxu0 0.0
    %804 = vmatpush2.msra.mxu0 0.0
    %805 = vmatprep.subr.mxu0 0.0
    %806 = vmatpush2.msra.mxu0 0.0
    %807 = vmatprep.subr.mxu0 0.0
    %808 = vmatpush2.msra.mxu0 0.0
    %809 = vmatprep.subr.mxu0 0.0
    %810 = vmatpush2.msra.mxu0 0.0
    %811 = vmatprep.subr.mxu0 0.0
    %812 = vmatpush2.msra.mxu0 0.0
    %813 = vmatprep.mubr.f32.mxu0 0.0
    %814 = vmatmul.mubr.f32.gmra.mxu0 %v676
    %v815 = vpop.f32.mrf.mxu0
    %v816 = vadd.f32 0.0, %v815
    %v817 = vpop.f32.mrf.mxu0
    %v818 = vadd.f32 0.0, %v817
    %819 = vdwg.mxu0
    %v824 = vrot.slane %v745, 6
    %v825 = vrot.slane %v747, 6
    %v826 = vrot.slane %v816, 6
    %v827 = vrot.slane %v818, 6
    %v832 = vadd.f32 %v179, %v824
    %v833 = vadd.f32 %v181, %v825
    %v834 = vadd.f32 %v250, %v826
    %v835 = vadd.f32 %v252, %v827
    %v836 = vxor.u32 %v832, 2147483648
    %v837 = vmul.f32 %v836, 1.442695
    %v838 = vpow.pop %v837
    %v839 = vadd.f32 %v838, 1.0
    %v840 = vrcp.pop %v839
    %v841 = vmul.f32 1.0, %v840
    %v842 = vxor.u32 %v833, 2147483648
    %v843 = vmul.f32 %v842, 1.442695
    %v844 = vpow.pop %v843
    %v845 = vadd.f32 %v844, 1.0
    %v846 = vrcp.pop %v845
    %v847 = vmul.f32 1.0, %v846
    %v848 = vtanh.pop %v834
    %v849 = vxor.u32 %v835, 2147483648
    %v850 = vmul.f32 %v849, 1.442695
    %v851 = vpow.pop %v850
    %v852 = vadd.f32 %v851, 1.0
    %v853 = vrcp.pop %v852
    %v854 = vmul.f32 1.0, %v853
    %v856 = vrot.slane %v671, 7
    %v858 = vmul.f32 %v847, %v856
    %v859 = vmul.f32 %v841, %v848
    %v860 = vadd.f32 %v858, %v859
    %v861 = vtanh.pop %v860
    %v862 = vmul.f32 %v854, %v861
    %863 = vst [vmem:[#allocation2] sm:$0x4] %v862
    %v865 = vrot.slane %v862, 2
    %867 = vmatprep.subr.mxu0 %v315
    %868 = vmatpush1.msra.mxu0 %v314
    %869 = vmatprep.subr.mxu0 %v311
    %870 = vmatpush1.msra.mxu0 %v310
    %871 = vmatprep.subr.mxu0 %v307
    %872 = vmatpush1.msra.mxu0 %v306
    %873 = vmatprep.subr.mxu0 %v303
    %874 = vmatpush1.msra.mxu0 %v302
    %875 = vmatprep.subr.mxu0 %v299
    %876 = vmatpush1.msra.mxu0 %v298
    %877 = vmatprep.subr.mxu0 %v295
    %878 = vmatpush1.msra.mxu0 %v294
    %879 = vmatprep.subr.mxu0 %v291
    %880 = vmatpush1.msra.mxu0 %v290
    %881 = vmatprep.subr.mxu0 %v287
    %882 = vmatpush1.msra.mxu0 %v286
    %883 = vmatprep.subr.mxu0 %v283
    %884 = vmatpush1.msra.mxu0 %v282
    %885 = vmatprep.subr.mxu0 %v279
    %886 = vmatpush1.msra.mxu0 %v278
    %887 = vmatprep.subr.mxu0 %v275
    %888 = vmatpush1.msra.mxu0 %v274
    %889 = vmatprep.subr.mxu0 %v271
    %890 = vmatpush1.msra.mxu0 %v270
    %891 = vmatprep.subr.mxu0 %v267
    %892 = vmatpush1.msra.mxu0 %v266
    %893 = vmatprep.subr.mxu0 %v263
    %894 = vmatpush1.msra.mxu0 %v262
    %895 = vmatprep.subr.mxu0 %v259
    %896 = vmatpush1.msra.mxu0 %v258
    %897 = vmatprep.subr.mxu0 %v255
    %898 = vmatpush1.msra.mxu0 %v254
    %899 = vmatprep.subr.mxu0 0.0
    %900 = vmatpush2.msra.mxu0 0.0
    %901 = vmatprep.subr.mxu0 0.0
    %902 = vmatpush2.msra.mxu0 0.0
    %903 = vmatprep.subr.mxu0 0.0
    %904 = vmatpush2.msra.mxu0 0.0
    %905 = vmatprep.subr.mxu0 0.0
    %906 = vmatpush2.msra.mxu0 0.0
    %907 = vmatprep.subr.mxu0 0.0
    %908 = vmatpush2.msra.mxu0 0.0
    %909 = vmatprep.subr.mxu0 0.0
    %910 = vmatpush2.msra.mxu0 0.0
    %911 = vmatprep.subr.mxu0 0.0
    %912 = vmatpush2.msra.mxu0 0.0
    %913 = vmatprep.subr.mxu0 0.0
    %914 = vmatpush2.msra.mxu0 0.0
    %915 = vmatprep.subr.mxu0 0.0
    %916 = vmatpush2.msra.mxu0 0.0
    %917 = vmatprep.subr.mxu0 0.0
    %918 = vmatpush2.msra.mxu0 0.0
    %919 = vmatprep.subr.mxu0 0.0
    %920 = vmatpush2.msra.mxu0 0.0
    %921 = vmatprep.subr.mxu0 0.0
    %922 = vmatpush2.msra.mxu0 0.0
    %923 = vmatprep.subr.mxu0 0.0
    %924 = vmatpush2.msra.mxu0 0.0
    %925 = vmatprep.subr.mxu0 0.0
    %926 = vmatpush2.msra.mxu0 0.0
    %927 = vmatprep.subr.mxu0 0.0
    %928 = vmatpush2.msra.mxu0 0.0
    %929 = vmatprep.subr.mxu0 0.0
    %930 = vmatpush2.msra.mxu0 0.0
    %931 = vmatprep.mubr.f32.mxu0 0.0
    %932 = vmatmul.mubr.f32.gmra.mxu0 %v865
    %v933 = vpop.f32.mrf.mxu0
    %v934 = vadd.f32 0.0, %v933
    %v935 = vpop.f32.mrf.mxu0
    %v936 = vadd.f32 0.0, %v935
    %937 = vdwg.mxu0
    %938 = vmatprep.subr.mxu0 %v317
    %939 = vmatpush1.msra.mxu0 %v316
    %940 = vmatprep.subr.mxu0 %v313
    %941 = vmatpush1.msra.mxu0 %v312
    %942 = vmatprep.subr.mxu0 %v309
    %943 = vmatpush1.msra.mxu0 %v308
    %944 = vmatprep.subr.mxu0 %v305
    %945 = vmatpush1.msra.mxu0 %v304
    %946 = vmatprep.subr.mxu0 %v301
    %947 = vmatpush1.msra.mxu0 %v300
    %948 = vmatprep.subr.mxu0 %v297
    %949 = vmatpush1.msra.mxu0 %v296
    %950 = vmatprep.subr.mxu0 %v293
    %951 = vmatpush1.msra.mxu0 %v292
    %952 = vmatprep.subr.mxu0 %v289
    %953 = vmatpush1.msra.mxu0 %v288
    %954 = vmatprep.subr.mxu0 %v285
    %955 = vmatpush1.msra.mxu0 %v284
    %956 = vmatprep.subr.mxu0 %v281
    %957 = vmatpush1.msra.mxu0 %v280
    %958 = vmatprep.subr.mxu0 %v277
    %959 = vmatpush1.msra.mxu0 %v276
    %960 = vmatprep.subr.mxu0 %v273
    %961 = vmatpush1.msra.mxu0 %v272
    %962 = vmatprep.subr.mxu0 %v269
    %963 = vmatpush1.msra.mxu0 %v268
    %964 = vmatprep.subr.mxu0 %v265
    %965 = vmatpush1.msra.mxu0 %v264
    %966 = vmatprep.subr.mxu0 %v261
    %967 = vmatpush1.msra.mxu0 %v260
    %968 = vmatprep.subr.mxu0 %v257
    %969 = vmatpush1.msra.mxu0 %v256
    %970 = vmatprep.subr.mxu0 0.0
    %971 = vmatpush2.msra.mxu0 0.0
    %972 = vmatprep.subr.mxu0 0.0
    %973 = vmatpush2.msra.mxu0 0.0
    %974 = vmatprep.subr.mxu0 0.0
    %975 = vmatpush2.msra.mxu0 0.0
    %976 = vmatprep.subr.mxu0 0.0
    %977 = vmatpush2.msra.mxu0 0.0
    %978 = vmatprep.subr.mxu0 0.0
    %979 = vmatpush2.msra.mxu0 0.0
    %980 = vmatprep.subr.mxu0 0.0
    %981 = vmatpush2.msra.mxu0 0.0
    %982 = vmatprep.subr.mxu0 0.0
    %983 = vmatpush2.msra.mxu0 0.0
    %984 = vmatprep.subr.mxu0 0.0
    %985 = vmatpush2.msra.mxu0 0.0
    %986 = vmatprep.subr.mxu0 0.0
    %987 = vmatpush2.msra.mxu0 0.0
    %988 = vmatprep.subr.mxu0 0.0
    %989 = vmatpush2.msra.mxu0 0.0
    %990 = vmatprep.subr.mxu0 0.0
    %991 = vmatpush2.msra.mxu0 0.0
    %992 = vmatprep.subr.mxu0 0.0
    %993 = vmatpush2.msra.mxu0 0.0
    %994 = vmatprep.subr.mxu0 0.0
    %995 = vmatpush2.msra.mxu0 0.0
    %996 = vmatprep.subr.mxu0 0.0
    %997 = vmatpush2.msra.mxu0 0.0
    %998 = vmatprep.subr.mxu0 0.0
    %999 = vmatpush2.msra.mxu0 0.0
    %1000 = vmatprep.subr.mxu0 0.0
    %1001 = vmatpush2.msra.mxu0 0.0
    %1002 = vmatprep.mubr.f32.mxu0 0.0
    %1003 = vmatmul.mubr.f32.gmra.mxu0 %v865
    %v1004 = vpop.f32.mrf.mxu0
    %v1005 = vadd.f32 0.0, %v1004
    %v1006 = vpop.f32.mrf.mxu0
    %v1007 = vadd.f32 0.0, %v1006
    %1008 = vdwg.mxu0
    %v1013 = vrot.slane %v934, 5
    %v1014 = vrot.slane %v936, 5
    %v1015 = vrot.slane %v1005, 5
    %v1016 = vrot.slane %v1007, 5
    %v1021 = vadd.f32 %v179, %v1013
    %v1022 = vadd.f32 %v181, %v1014
    %v1023 = vadd.f32 %v250, %v1015
    %v1024 = vadd.f32 %v252, %v1016
    %v1025 = vxor.u32 %v1021, 2147483648
    %v1026 = vmul.f32 %v1025, 1.442695
    %v1027 = vpow.pop %v1026
    %v1028 = vadd.f32 %v1027, 1.0
    %v1029 = vrcp.pop %v1028
    %v1030 = vmul.f32 1.0, %v1029
    %v1031 = vxor.u32 %v1022, 2147483648
    %v1032 = vmul.f32 %v1031, 1.442695
    %v1033 = vpow.pop %v1032
    %v1034 = vadd.f32 %v1033, 1.0
    %v1035 = vrcp.pop %v1034
    %v1036 = vmul.f32 1.0, %v1035
    %v1037 = vtanh.pop %v1023
    %v1038 = vxor.u32 %v1024, 2147483648
    %v1039 = vmul.f32 %v1038, 1.442695
    %v1040 = vpow.pop %v1039
    %v1041 = vadd.f32 %v1040, 1.0
    %v1042 = vrcp.pop %v1041
    %v1043 = vmul.f32 1.0, %v1042
    %v1045 = vrot.slane %v860, 7
    %v1047 = vmul.f32 %v1036, %v1045
    %v1048 = vmul.f32 %v1030, %v1037
    %v1049 = vadd.f32 %v1047, %v1048
    %v1050 = vtanh.pop %v1049
    %v1051 = vmul.f32 %v1043, %v1050
    %1052 = vst [vmem:[#allocation2] sm:$0x8] %v1051
    %v1054 = vrot.slane %v1051, 3
    %1056 = vmatprep.subr.mxu0 %v315
    %1057 = vmatpush1.msra.mxu0 %v314
    %1058 = vmatprep.subr.mxu0 %v311
    %1059 = vmatpush1.msra.mxu0 %v310
    %1060 = vmatprep.subr.mxu0 %v307
    %1061 = vmatpush1.msra.mxu0 %v306
    %1062 = vmatprep.subr.mxu0 %v303
    %1063 = vmatpush1.msra.mxu0 %v302
    %1064 = vmatprep.subr.mxu0 %v299
    %1065 = vmatpush1.msra.mxu0 %v298
    %1066 = vmatprep.subr.mxu0 %v295
    %1067 = vmatpush1.msra.mxu0 %v294
    %1068 = vmatprep.subr.mxu0 %v291
    %1069 = vmatpush1.msra.mxu0 %v290
    %1070 = vmatprep.subr.mxu0 %v287
    %1071 = vmatpush1.msra.mxu0 %v286
    %1072 = vmatprep.subr.mxu0 %v283
    %1073 = vmatpush1.msra.mxu0 %v282
    %1074 = vmatprep.subr.mxu0 %v279
    %1075 = vmatpush1.msra.mxu0 %v278
    %1076 = vmatprep.subr.mxu0 %v275
    %1077 = vmatpush1.msra.mxu0 %v274
    %1078 = vmatprep.subr.mxu0 %v271
    %1079 = vmatpush1.msra.mxu0 %v270
    %1080 = vmatprep.subr.mxu0 %v267
    %1081 = vmatpush1.msra.mxu0 %v266
    %1082 = vmatprep.subr.mxu0 %v263
    %1083 = vmatpush1.msra.mxu0 %v262
    %1084 = vmatprep.subr.mxu0 %v259
    %1085 = vmatpush1.msra.mxu0 %v258
    %1086 = vmatprep.subr.mxu0 %v255
    %1087 = vmatpush1.msra.mxu0 %v254
    %1088 = vmatprep.subr.mxu0 0.0
    %1089 = vmatpush2.msra.mxu0 0.0
    %1090 = vmatprep.subr.mxu0 0.0
    %1091 = vmatpush2.msra.mxu0 0.0
    %1092 = vmatprep.subr.mxu0 0.0
    %1093 = vmatpush2.msra.mxu0 0.0
    %1094 = vmatprep.subr.mxu0 0.0
    %1095 = vmatpush2.msra.mxu0 0.0
    %1096 = vmatprep.subr.mxu0 0.0
    %1097 = vmatpush2.msra.mxu0 0.0
    %1098 = vmatprep.subr.mxu0 0.0
    %1099 = vmatpush2.msra.mxu0 0.0
    %1100 = vmatprep.subr.mxu0 0.0
    %1101 = vmatpush2.msra.mxu0 0.0
    %1102 = vmatprep.subr.mxu0 0.0
    %1103 = vmatpush2.msra.mxu0 0.0
    %1104 = vmatprep.subr.mxu0 0.0
    %1105 = vmatpush2.msra.mxu0 0.0
    %1106 = vmatprep.subr.mxu0 0.0
    %1107 = vmatpush2.msra.mxu0 0.0
    %1108 = vmatprep.subr.mxu0 0.0
    %1109 = vmatpush2.msra.mxu0 0.0
    %1110 = vmatprep.subr.mxu0 0.0
    %1111 = vmatpush2.msra.mxu0 0.0
    %1112 = vmatprep.subr.mxu0 0.0
    %1113 = vmatpush2.msra.mxu0 0.0
    %1114 = vmatprep.subr.mxu0 0.0
    %1115 = vmatpush2.msra.mxu0 0.0
    %1116 = vmatprep.subr.mxu0 0.0
    %1117 = vmatpush2.msra.mxu0 0.0
    %1118 = vmatprep.subr.mxu0 0.0
    %1119 = vmatpush2.msra.mxu0 0.0
    %1120 = vmatprep.mubr.f32.mxu0 0.0
    %1121 = vmatmul.mubr.f32.gmra.mxu0 %v1054
    %v1122 = vpop.f32.mrf.mxu0
    %v1123 = vadd.f32 0.0, %v1122
    %v1124 = vpop.f32.mrf.mxu0
    %v1125 = vadd.f32 0.0, %v1124
    %1126 = vdwg.mxu0
    %1127 = vmatprep.subr.mxu0 %v317
    %1128 = vmatpush1.msra.mxu0 %v316
    %1129 = vmatprep.subr.mxu0 %v313
    %1130 = vmatpush1.msra.mxu0 %v312
    %1131 = vmatprep.subr.mxu0 %v309
    %1132 = vmatpush1.msra.mxu0 %v308
    %1133 = vmatprep.subr.mxu0 %v305
    %1134 = vmatpush1.msra.mxu0 %v304
    %1135 = vmatprep.subr.mxu0 %v301
    %1136 = vmatpush1.msra.mxu0 %v300
    %1137 = vmatprep.subr.mxu0 %v297
    %1138 = vmatpush1.msra.mxu0 %v296
    %1139 = vmatprep.subr.mxu0 %v293
    %1140 = vmatpush1.msra.mxu0 %v292
    %1141 = vmatprep.subr.mxu0 %v289
    %1142 = vmatpush1.msra.mxu0 %v288
    %1143 = vmatprep.subr.mxu0 %v285
    %1144 = vmatpush1.msra.mxu0 %v284
    %1145 = vmatprep.subr.mxu0 %v281
    %1146 = vmatpush1.msra.mxu0 %v280
    %1147 = vmatprep.subr.mxu0 %v277
    %1148 = vmatpush1.msra.mxu0 %v276
    %1149 = vmatprep.subr.mxu0 %v273
    %1150 = vmatpush1.msra.mxu0 %v272
    %1151 = vmatprep.subr.mxu0 %v269
    %1152 = vmatpush1.msra.mxu0 %v268
    %1153 = vmatprep.subr.mxu0 %v265
    %1154 = vmatpush1.msra.mxu0 %v264
    %1155 = vmatprep.subr.mxu0 %v261
    %1156 = vmatpush1.msra.mxu0 %v260
    %1157 = vmatprep.subr.mxu0 %v257
    %1158 = vmatpush1.msra.mxu0 %v256
    %1159 = vmatprep.subr.mxu0 0.0
    %1160 = vmatpush2.msra.mxu0 0.0
    %1161 = vmatprep.subr.mxu0 0.0
    %1162 = vmatpush2.msra.mxu0 0.0
    %1163 = vmatprep.subr.mxu0 0.0
    %1164 = vmatpush2.msra.mxu0 0.0
    %1165 = vmatprep.subr.mxu0 0.0
    %1166 = vmatpush2.msra.mxu0 0.0
    %1167 = vmatprep.subr.mxu0 0.0
    %1168 = vmatpush2.msra.mxu0 0.0
    %1169 = vmatprep.subr.mxu0 0.0
    %1170 = vmatpush2.msra.mxu0 0.0
    %1171 = vmatprep.subr.mxu0 0.0
    %1172 = vmatpush2.msra.mxu0 0.0
    %1173 = vmatprep.subr.mxu0 0.0
    %1174 = vmatpush2.msra.mxu0 0.0
    %1175 = vmatprep.subr.mxu0 0.0
    %1176 = vmatpush2.msra.mxu0 0.0
    %1177 = vmatprep.subr.mxu0 0.0
    %1178 = vmatpush2.msra.mxu0 0.0
    %1179 = vmatprep.subr.mxu0 0.0
    %1180 = vmatpush2.msra.mxu0 0.0
    %1181 = vmatprep.subr.mxu0 0.0
    %1182 = vmatpush2.msra.mxu0 0.0
    %1183 = vmatprep.subr.mxu0 0.0
    %1184 = vmatpush2.msra.mxu0 0.0
    %1185 = vmatprep.subr.mxu0 0.0
    %1186 = vmatpush2.msra.mxu0 0.0
    %1187 = vmatprep.subr.mxu0 0.0
    %1188 = vmatpush2.msra.mxu0 0.0
    %1189 = vmatprep.subr.mxu0 0.0
    %1190 = vmatpush2.msra.mxu0 0.0
    %1191 = vmatprep.mubr.f32.mxu0 0.0
    %1192 = vmatmul.mubr.f32.gmra.mxu0 %v1054
    %v1193 = vpop.f32.mrf.mxu0
    %v1194 = vadd.f32 0.0, %v1193
    %v1195 = vpop.f32.mrf.mxu0
    %v1196 = vadd.f32 0.0, %v1195
    %1197 = vdwg.mxu0
    %v1202 = vrot.slane %v1123, 4
    %v1203 = vrot.slane %v1125, 4
    %v1204 = vrot.slane %v1194, 4
    %v1205 = vrot.slane %v1196, 4
    %v1210 = vadd.f32 %v179, %v1202
    %v1211 = vadd.f32 %v181, %v1203
    %v1212 = vadd.f32 %v250, %v1204
    %v1213 = vadd.f32 %v252, %v1205
    %v1214 = vxor.u32 %v1210, 2147483648
    %v1215 = vmul.f32 %v1214, 1.442695
    %v1216 = vpow.pop %v1215
    %v1217 = vadd.f32 %v1216, 1.0
    %v1218 = vrcp.pop %v1217
    %v1219 = vmul.f32 1.0, %v1218
    %v1220 = vxor.u32 %v1211, 2147483648
    %v1221 = vmul.f32 %v1220, 1.442695
    %v1222 = vpow.pop %v1221
    %v1223 = vadd.f32 %v1222, 1.0
    %v1224 = vrcp.pop %v1223
    %v1225 = vmul.f32 1.0, %v1224
    %v1226 = vtanh.pop %v1212
    %v1227 = vxor.u32 %v1213, 2147483648
    %v1228 = vmul.f32 %v1227, 1.442695
    %v1229 = vpow.pop %v1228
    %v1230 = vadd.f32 %v1229, 1.0
    %v1231 = vrcp.pop %v1230
    %v1232 = vmul.f32 1.0, %v1231
    %v1234 = vrot.slane %v1049, 7
    %v1236 = vmul.f32 %v1225, %v1234
    %v1237 = vmul.f32 %v1219, %v1226
    %v1238 = vadd.f32 %v1236, %v1237
    %v1239 = vtanh.pop %v1238
    %v1240 = vmul.f32 %v1232, %v1239
    %1241 = vst [vmem:[#allocation2] sm:$0x10] %v1240
    %v1243 = vrot.slane %v1240, 4
    %1245 = vmatprep.subr.mxu0 %v315
    %1246 = vmatpush1.msra.mxu0 %v314
    %1247 = vmatprep.subr.mxu0 %v311
    %1248 = vmatpush1.msra.mxu0 %v310
    %1249 = vmatprep.subr.mxu0 %v307
    %1250 = vmatpush1.msra.mxu0 %v306
    %1251 = vmatprep.subr.mxu0 %v303
    %1252 = vmatpush1.msra.mxu0 %v302
    %1253 = vmatprep.subr.mxu0 %v299
    %1254 = vmatpush1.msra.mxu0 %v298
    %1255 = vmatprep.subr.mxu0 %v295
    %1256 = vmatpush1.msra.mxu0 %v294
    %1257 = vmatprep.subr.mxu0 %v291
    %1258 = vmatpush1.msra.mxu0 %v290
    %1259 = vmatprep.subr.mxu0 %v287
    %1260 = vmatpush1.msra.mxu0 %v286
    %1261 = vmatprep.subr.mxu0 %v283
    %1262 = vmatpush1.msra.mxu0 %v282
    %1263 = vmatprep.subr.mxu0 %v279
    %1264 = vmatpush1.msra.mxu0 %v278
    %1265 = vmatprep.subr.mxu0 %v275
    %1266 = vmatpush1.msra.mxu0 %v274
    %1267 = vmatprep.subr.mxu0 %v271
    %1268 = vmatpush1.msra.mxu0 %v270
    %1269 = vmatprep.subr.mxu0 %v267
    %1270 = vmatpush1.msra.mxu0 %v266
    %1271 = vmatprep.subr.mxu0 %v263
    %1272 = vmatpush1.msra.mxu0 %v262
    %1273 = vmatprep.subr.mxu0 %v259
    %1274 = vmatpush1.msra.mxu0 %v258
    %1275 = vmatprep.subr.mxu0 %v255
    %1276 = vmatpush1.msra.mxu0 %v254
    %1277 = vmatprep.subr.mxu0 0.0
    %1278 = vmatpush2.msra.mxu0 0.0
    %1279 = vmatprep.subr.mxu0 0.0
    %1280 = vmatpush2.msra.mxu0 0.0
    %1281 = vmatprep.subr.mxu0 0.0
    %1282 = vmatpush2.msra.mxu0 0.0
    %1283 = vmatprep.subr.mxu0 0.0
    %1284 = vmatpush2.msra.mxu0 0.0
    %1285 = vmatprep.subr.mxu0 0.0
    %1286 = vmatpush2.msra.mxu0 0.0
    %1287 = vmatprep.subr.mxu0 0.0
    %1288 = vmatpush2.msra.mxu0 0.0
    %1289 = vmatprep.subr.mxu0 0.0
    %1290 = vmatpush2.msra.mxu0 0.0
    %1291 = vmatprep.subr.mxu0 0.0
    %1292 = vmatpush2.msra.mxu0 0.0
    %1293 = vmatprep.subr.mxu0 0.0
    %1294 = vmatpush2.msra.mxu0 0.0
    %1295 = vmatprep.subr.mxu0 0.0
    %1296 = vmatpush2.msra.mxu0 0.0
    %1297 = vmatprep.subr.mxu0 0.0
    %1298 = vmatpush2.msra.mxu0 0.0
    %1299 = vmatprep.subr.mxu0 0.0
    %1300 = vmatpush2.msra.mxu0 0.0
    %1301 = vmatprep.subr.mxu0 0.0
    %1302 = vmatpush2.msra.mxu0 0.0
    %1303 = vmatprep.subr.mxu0 0.0
    %1304 = vmatpush2.msra.mxu0 0.0
    %1305 = vmatprep.subr.mxu0 0.0
    %1306 = vmatpush2.msra.mxu0 0.0
    %1307 = vmatprep.subr.mxu0 0.0
    %1308 = vmatpush2.msra.mxu0 0.0
    %1309 = vmatprep.mubr.f32.mxu0 0.0
    %1310 = vmatmul.mubr.f32.gmra.mxu0 %v1243
    %v1311 = vpop.f32.mrf.mxu0
    %v1312 = vadd.f32 0.0, %v1311
    %v1313 = vpop.f32.mrf.mxu0
    %v1314 = vadd.f32 0.0, %v1313
    %1315 = vdwg.mxu0
    %1316 = vmatprep.subr.mxu0 %v317
    %1317 = vmatpush1.msra.mxu0 %v316
    %1318 = vmatprep.subr.mxu0 %v313
    %1319 = vmatpush1.msra.mxu0 %v312
    %1320 = vmatprep.subr.mxu0 %v309
    %1321 = vmatpush1.msra.mxu0 %v308
    %1322 = vmatprep.subr.mxu0 %v305
    %1323 = vmatpush1.msra.mxu0 %v304
    %1324 = vmatprep.subr.mxu0 %v301
    %1325 = vmatpush1.msra.mxu0 %v300
    %1326 = vmatprep.subr.mxu0 %v297
    %1327 = vmatpush1.msra.mxu0 %v296
    %1328 = vmatprep.subr.mxu0 %v293
    %1329 = vmatpush1.msra.mxu0 %v292
    %1330 = vmatprep.subr.mxu0 %v289
    %1331 = vmatpush1.msra.mxu0 %v288
    %1332 = vmatprep.subr.mxu0 %v285
    %1333 = vmatpush1.msra.mxu0 %v284
    %1334 = vmatprep.subr.mxu0 %v281
    %1335 = vmatpush1.msra.mxu0 %v280
    %1336 = vmatprep.subr.mxu0 %v277
    %1337 = vmatpush1.msra.mxu0 %v276
    %1338 = vmatprep.subr.mxu0 %v273
    %1339 = vmatpush1.msra.mxu0 %v272
    %1340 = vmatprep.subr.mxu0 %v269
    %1341 = vmatpush1.msra.mxu0 %v268
    %1342 = vmatprep.subr.mxu0 %v265
    %1343 = vmatpush1.msra.mxu0 %v264
    %1344 = vmatprep.subr.mxu0 %v261
    %1345 = vmatpush1.msra.mxu0 %v260
    %1346 = vmatprep.subr.mxu0 %v257
    %1347 = vmatpush1.msra.mxu0 %v256
    %1348 = vmatprep.subr.mxu0 0.0
    %1349 = vmatpush2.msra.mxu0 0.0
    %1350 = vmatprep.subr.mxu0 0.0
    %1351 = vmatpush2.msra.mxu0 0.0
    %1352 = vmatprep.subr.mxu0 0.0
    %1353 = vmatpush2.msra.mxu0 0.0
    %1354 = vmatprep.subr.mxu0 0.0
    %1355 = vmatpush2.msra.mxu0 0.0
    %1356 = vmatprep.subr.mxu0 0.0
    %1357 = vmatpush2.msra.mxu0 0.0
    %1358 = vmatprep.subr.mxu0 0.0
    %1359 = vmatpush2.msra.mxu0 0.0
    %1360 = vmatprep.subr.mxu0 0.0
    %1361 = vmatpush2.msra.mxu0 0.0
    %1362 = vmatprep.subr.mxu0 0.0
    %1363 = vmatpush2.msra.mxu0 0.0
    %1364 = vmatprep.subr.mxu0 0.0
    %1365 = vmatpush2.msra.mxu0 0.0
    %1366 = vmatprep.subr.mxu0 0.0
    %1367 = vmatpush2.msra.mxu0 0.0
    %1368 = vmatprep.subr.mxu0 0.0
    %1369 = vmatpush2.msra.mxu0 0.0
    %1370 = vmatprep.subr.mxu0 0.0
    %1371 = vmatpush2.msra.mxu0 0.0
    %1372 = vmatprep.subr.mxu0 0.0
    %1373 = vmatpush2.msra.mxu0 0.0
    %1374 = vmatprep.subr.mxu0 0.0
    %1375 = vmatpush2.msra.mxu0 0.0
    %1376 = vmatprep.subr.mxu0 0.0
    %1377 = vmatpush2.msra.mxu0 0.0
    %1378 = vmatprep.subr.mxu0 0.0
    %1379 = vmatpush2.msra.mxu0 0.0
    %1380 = vmatprep.mubr.f32.mxu0 0.0
    %1381 = vmatmul.mubr.f32.gmra.mxu0 %v1243
    %v1382 = vpop.f32.mrf.mxu0
    %v1383 = vadd.f32 0.0, %v1382
    %v1384 = vpop.f32.mrf.mxu0
    %v1385 = vadd.f32 0.0, %v1384
    %1386 = vdwg.mxu0
    %v1391 = vrot.slane %v1312, 3
    %v1392 = vrot.slane %v1314, 3
    %v1393 = vrot.slane %v1383, 3
    %v1394 = vrot.slane %v1385, 3
    %v1399 = vadd.f32 %v179, %v1391
    %v1400 = vadd.f32 %v181, %v1392
    %v1401 = vadd.f32 %v250, %v1393
    %v1402 = vadd.f32 %v252, %v1394
    %v1403 = vxor.u32 %v1399, 2147483648
    %v1404 = vmul.f32 %v1403, 1.442695
    %v1405 = vpow.pop %v1404
    %v1406 = vadd.f32 %v1405, 1.0
    %v1407 = vrcp.pop %v1406
    %v1408 = vmul.f32 1.0, %v1407
    %v1409 = vxor.u32 %v1400, 2147483648
    %v1410 = vmul.f32 %v1409, 1.442695
    %v1411 = vpow.pop %v1410
    %v1412 = vadd.f32 %v1411, 1.0
    %v1413 = vrcp.pop %v1412
    %v1414 = vmul.f32 1.0, %v1413
    %v1415 = vtanh.pop %v1401
    %v1416 = vxor.u32 %v1402, 2147483648
    %v1417 = vmul.f32 %v1416, 1.442695
    %v1418 = vpow.pop %v1417
    %v1419 = vadd.f32 %v1418, 1.0
    %v1420 = vrcp.pop %v1419
    %v1421 = vmul.f32 1.0, %v1420
    %v1423 = vrot.slane %v1238, 7
    %v1425 = vmul.f32 %v1414, %v1423
    %v1426 = vmul.f32 %v1408, %v1415
    %v1427 = vadd.f32 %v1425, %v1426
    %v1428 = vtanh.pop %v1427
    %v1429 = vmul.f32 %v1421, %v1428
    %1430 = vst [vmem:[#allocation2] sm:$0x20] %v1429
    %v1432 = vrot.slane %v1429, 5
    %1434 = vmatprep.subr.mxu0 %v315
    %1435 = vmatpush1.msra.mxu0 %v314
    %1436 = vmatprep.subr.mxu0 %v311
    %1437 = vmatpush1.msra.mxu0 %v310
    %1438 = vmatprep.subr.mxu0 %v307
    %1439 = vmatpush1.msra.mxu0 %v306
    %1440 = vmatprep.subr.mxu0 %v303
    %1441 = vmatpush1.msra.mxu0 %v302
    %1442 = vmatprep.subr.mxu0 %v299
    %1443 = vmatpush1.msra.mxu0 %v298
    %1444 = vmatprep.subr.mxu0 %v295
    %1445 = vmatpush1.msra.mxu0 %v294
    %1446 = vmatprep.subr.mxu0 %v291
    %1447 = vmatpush1.msra.mxu0 %v290
    %1448 = vmatprep.subr.mxu0 %v287
    %1449 = vmatpush1.msra.mxu0 %v286
    %1450 = vmatprep.subr.mxu0 %v283
    %1451 = vmatpush1.msra.mxu0 %v282
    %1452 = vmatprep.subr.mxu0 %v279
    %1453 = vmatpush1.msra.mxu0 %v278
    %1454 = vmatprep.subr.mxu0 %v275
    %1455 = vmatpush1.msra.mxu0 %v274
    %1456 = vmatprep.subr.mxu0 %v271
    %1457 = vmatpush1.msra.mxu0 %v270
    %1458 = vmatprep.subr.mxu0 %v267
    %1459 = vmatpush1.msra.mxu0 %v266
    %1460 = vmatprep.subr.mxu0 %v263
    %1461 = vmatpush1.msra.mxu0 %v262
    %1462 = vmatprep.subr.mxu0 %v259
    %1463 = vmatpush1.msra.mxu0 %v258
    %1464 = vmatprep.subr.mxu0 %v255
    %1465 = vmatpush1.msra.mxu0 %v254
    %1466 = vmatprep.subr.mxu0 0.0
    %1467 = vmatpush2.msra.mxu0 0.0
    %1468 = vmatprep.subr.mxu0 0.0
    %1469 = vmatpush2.msra.mxu0 0.0
    %1470 = vmatprep.subr.mxu0 0.0
    %1471 = vmatpush2.msra.mxu0 0.0
    %1472 = vmatprep.subr.mxu0 0.0
    %1473 = vmatpush2.msra.mxu0 0.0
    %1474 = vmatprep.subr.mxu0 0.0
    %1475 = vmatpush2.msra.mxu0 0.0
    %1476 = vmatprep.subr.mxu0 0.0
    %1477 = vmatpush2.msra.mxu0 0.0
    %1478 = vmatprep.subr.mxu0 0.0
    %1479 = vmatpush2.msra.mxu0 0.0
    %1480 = vmatprep.subr.mxu0 0.0
    %1481 = vmatpush2.msra.mxu0 0.0
    %1482 = vmatprep.subr.mxu0 0.0
    %1483 = vmatpush2.msra.mxu0 0.0
    %1484 = vmatprep.subr.mxu0 0.0
    %1485 = vmatpush2.msra.mxu0 0.0
    %1486 = vmatprep.subr.mxu0 0.0
    %1487 = vmatpush2.msra.mxu0 0.0
    %1488 = vmatprep.subr.mxu0 0.0
    %1489 = vmatpush2.msra.mxu0 0.0
    %1490 = vmatprep.subr.mxu0 0.0
    %1491 = vmatpush2.msra.mxu0 0.0
    %1492 = vmatprep.subr.mxu0 0.0
    %1493 = vmatpush2.msra.mxu0 0.0
    %1494 = vmatprep.subr.mxu0 0.0
    %1495 = vmatpush2.msra.mxu0 0.0
    %1496 = vmatprep.subr.mxu0 0.0
    %1497 = vmatpush2.msra.mxu0 0.0
    %1498 = vmatprep.mubr.f32.mxu0 0.0
    %1499 = vmatmul.mubr.f32.gmra.mxu0 %v1432
    %v1500 = vpop.f32.mrf.mxu0
    %v1501 = vadd.f32 0.0, %v1500
    %v1502 = vpop.f32.mrf.mxu0
    %v1503 = vadd.f32 0.0, %v1502
    %1504 = vdwg.mxu0
    %1505 = vmatprep.subr.mxu0 %v317
    %1506 = vmatpush1.msra.mxu0 %v316
    %1507 = vmatprep.subr.mxu0 %v313
    %1508 = vmatpush1.msra.mxu0 %v312
    %1509 = vmatprep.subr.mxu0 %v309
    %1510 = vmatpush1.msra.mxu0 %v308
    %1511 = vmatprep.subr.mxu0 %v305
    %1512 = vmatpush1.msra.mxu0 %v304
    %1513 = vmatprep.subr.mxu0 %v301
    %1514 = vmatpush1.msra.mxu0 %v300
    %1515 = vmatprep.subr.mxu0 %v297
    %1516 = vmatpush1.msra.mxu0 %v296
    %1517 = vmatprep.subr.mxu0 %v293
    %1518 = vmatpush1.msra.mxu0 %v292
    %1519 = vmatprep.subr.mxu0 %v289
    %1520 = vmatpush1.msra.mxu0 %v288
    %1521 = vmatprep.subr.mxu0 %v285
    %1522 = vmatpush1.msra.mxu0 %v284
    %1523 = vmatprep.subr.mxu0 %v281
    %1524 = vmatpush1.msra.mxu0 %v280
    %1525 = vmatprep.subr.mxu0 %v277
    %1526 = vmatpush1.msra.mxu0 %v276
    %1527 = vmatprep.subr.mxu0 %v273
    %1528 = vmatpush1.msra.mxu0 %v272
    %1529 = vmatprep.subr.mxu0 %v269
    %1530 = vmatpush1.msra.mxu0 %v268
    %1531 = vmatprep.subr.mxu0 %v265
    %1532 = vmatpush1.msra.mxu0 %v264
    %1533 = vmatprep.subr.mxu0 %v261
    %1534 = vmatpush1.msra.mxu0 %v260
    %1535 = vmatprep.subr.mxu0 %v257
    %1536 = vmatpush1.msra.mxu0 %v256
    %1537 = vmatprep.subr.mxu0 0.0
    %1538 = vmatpush2.msra.mxu0 0.0
    %1539 = vmatprep.subr.mxu0 0.0
    %1540 = vmatpush2.msra.mxu0 0.0
    %1541 = vmatprep.subr.mxu0 0.0
    %1542 = vmatpush2.msra.mxu0 0.0
    %1543 = vmatprep.subr.mxu0 0.0
    %1544 = vmatpush2.msra.mxu0 0.0
    %1545 = vmatprep.subr.mxu0 0.0
    %1546 = vmatpush2.msra.mxu0 0.0
    %1547 = vmatprep.subr.mxu0 0.0
    %1548 = vmatpush2.msra.mxu0 0.0
    %1549 = vmatprep.subr.mxu0 0.0
    %1550 = vmatpush2.msra.mxu0 0.0
    %1551 = vmatprep.subr.mxu0 0.0
    %1552 = vmatpush2.msra.mxu0 0.0
    %1553 = vmatprep.subr.mxu0 0.0
    %1554 = vmatpush2.msra.mxu0 0.0
    %1555 = vmatprep.subr.mxu0 0.0
    %1556 = vmatpush2.msra.mxu0 0.0
    %1557 = vmatprep.subr.mxu0 0.0
    %1558 = vmatpush2.msra.mxu0 0.0
    %1559 = vmatprep.subr.mxu0 0.0
    %1560 = vmatpush2.msra.mxu0 0.0
    %1561 = vmatprep.subr.mxu0 0.0
    %1562 = vmatpush2.msra.mxu0 0.0
    %1563 = vmatprep.subr.mxu0 0.0
    %1564 = vmatpush2.msra.mxu0 0.0
    %1565 = vmatprep.subr.mxu0 0.0
    %1566 = vmatpush2.msra.mxu0 0.0
    %1567 = vmatprep.subr.mxu0 0.0
    %1568 = vmatpush2.msra.mxu0 0.0
    %1569 = vmatprep.mubr.f32.mxu0 0.0
    %1570 = vmatmul.mubr.f32.gmra.mxu0 %v1432
    %v1571 = vpop.f32.mrf.mxu0
    %v1572 = vadd.f32 0.0, %v1571
    %v1573 = vpop.f32.mrf.mxu0
    %v1574 = vadd.f32 0.0, %v1573
    %1575 = vdwg.mxu0
    %v1580 = vrot.slane %v1501, 2
    %v1581 = vrot.slane %v1503, 2
    %v1582 = vrot.slane %v1572, 2
    %v1583 = vrot.slane %v1574, 2
    %v1588 = vadd.f32 %v179, %v1580
    %v1589 = vadd.f32 %v181, %v1581
    %v1590 = vadd.f32 %v250, %v1582
    %v1591 = vadd.f32 %v252, %v1583
    %v1592 = vxor.u32 %v1588, 2147483648
    %v1593 = vmul.f32 %v1592, 1.442695
    %v1594 = vpow.pop %v1593
    %v1595 = vadd.f32 %v1594, 1.0
    %v1596 = vrcp.pop %v1595
    %v1597 = vmul.f32 1.0, %v1596
    %v1598 = vxor.u32 %v1589, 2147483648
    %v1599 = vmul.f32 %v1598, 1.442695
    %v1600 = vpow.pop %v1599
    %v1601 = vadd.f32 %v1600, 1.0
    %v1602 = vrcp.pop %v1601
    %v1603 = vmul.f32 1.0, %v1602
    %v1604 = vtanh.pop %v1590
    %v1605 = vxor.u32 %v1591, 2147483648
    %v1606 = vmul.f32 %v1605, 1.442695
    %v1607 = vpow.pop %v1606
    %v1608 = vadd.f32 %v1607, 1.0
    %v1609 = vrcp.pop %v1608
    %v1610 = vmul.f32 1.0, %v1609
    %v1612 = vrot.slane %v1427, 7
    %v1614 = vmul.f32 %v1603, %v1612
    %v1615 = vmul.f32 %v1597, %v1604
    %v1616 = vadd.f32 %v1614, %v1615
    %v1617 = vtanh.pop %v1616
    %v1618 = vmul.f32 %v1610, %v1617
    %1619 = vst [vmem:[#allocation2] sm:$0x40] %v1618
    %v1621 = vrot.slane %v1618, 6
    %1623 = vmatprep.subr.mxu0 %v315
    %1624 = vmatpush1.msra.mxu0 %v314
    %1625 = vmatprep.subr.mxu0 %v311
    %1626 = vmatpush1.msra.mxu0 %v310
    %1627 = vmatprep.subr.mxu0 %v307
    %1628 = vmatpush1.msra.mxu0 %v306
    %1629 = vmatprep.subr.mxu0 %v303
    %1630 = vmatpush1.msra.mxu0 %v302
    %1631 = vmatprep.subr.mxu0 %v299
    %1632 = vmatpush1.msra.mxu0 %v298
    %1633 = vmatprep.subr.mxu0 %v295
    %1634 = vmatpush1.msra.mxu0 %v294
    %1635 = vmatprep.subr.mxu0 %v291
    %1636 = vmatpush1.msra.mxu0 %v290
    %1637 = vmatprep.subr.mxu0 %v287
    %1638 = vmatpush1.msra.mxu0 %v286
    %1639 = vmatprep.subr.mxu0 %v283
    %1640 = vmatpush1.msra.mxu0 %v282
    %1641 = vmatprep.subr.mxu0 %v279
    %1642 = vmatpush1.msra.mxu0 %v278
    %1643 = vmatprep.subr.mxu0 %v275
    %1644 = vmatpush1.msra.mxu0 %v274
    %1645 = vmatprep.subr.mxu0 %v271
    %1646 = vmatpush1.msra.mxu0 %v270
    %1647 = vmatprep.subr.mxu0 %v267
    %1648 = vmatpush1.msra.mxu0 %v266
    %1649 = vmatprep.subr.mxu0 %v263
    %1650 = vmatpush1.msra.mxu0 %v262
    %1651 = vmatprep.subr.mxu0 %v259
    %1652 = vmatpush1.msra.mxu0 %v258
    %1653 = vmatprep.subr.mxu0 %v255
    %1654 = vmatpush1.msra.mxu0 %v254
    %1655 = vmatprep.subr.mxu0 0.0
    %1656 = vmatpush2.msra.mxu0 0.0
    %1657 = vmatprep.subr.mxu0 0.0
    %1658 = vmatpush2.msra.mxu0 0.0
    %1659 = vmatprep.subr.mxu0 0.0
    %1660 = vmatpush2.msra.mxu0 0.0
    %1661 = vmatprep.subr.mxu0 0.0
    %1662 = vmatpush2.msra.mxu0 0.0
    %1663 = vmatprep.subr.mxu0 0.0
    %1664 = vmatpush2.msra.mxu0 0.0
    %1665 = vmatprep.subr.mxu0 0.0
    %1666 = vmatpush2.msra.mxu0 0.0
    %1667 = vmatprep.subr.mxu0 0.0
    %1668 = vmatpush2.msra.mxu0 0.0
    %1669 = vmatprep.subr.mxu0 0.0
    %1670 = vmatpush2.msra.mxu0 0.0
    %1671 = vmatprep.subr.mxu0 0.0
    %1672 = vmatpush2.msra.mxu0 0.0
    %1673 = vmatprep.subr.mxu0 0.0
    %1674 = vmatpush2.msra.mxu0 0.0
    %1675 = vmatprep.subr.mxu0 0.0
    %1676 = vmatpush2.msra.mxu0 0.0
    %1677 = vmatprep.subr.mxu0 0.0
    %1678 = vmatpush2.msra.mxu0 0.0
    %1679 = vmatprep.subr.mxu0 0.0
    %1680 = vmatpush2.msra.mxu0 0.0
    %1681 = vmatprep.subr.mxu0 0.0
    %1682 = vmatpush2.msra.mxu0 0.0
    %1683 = vmatprep.subr.mxu0 0.0
    %1684 = vmatpush2.msra.mxu0 0.0
    %1685 = vmatprep.subr.mxu0 0.0
    %1686 = vmatpush2.msra.mxu0 0.0
    %1687 = vmatprep.mubr.f32.mxu0 0.0
    %1688 = vmatmul.mubr.f32.gmra.mxu0 %v1621
    %v1689 = vpop.f32.mrf.mxu0
    %v1690 = vadd.f32 0.0, %v1689
    %v1691 = vpop.f32.mrf.mxu0
    %v1692 = vadd.f32 0.0, %v1691
    %1693 = vdwg.mxu0
    %1694 = vmatprep.subr.mxu0 %v317
    %1695 = vmatpush1.msra.mxu0 %v316
    %1696 = vmatprep.subr.mxu0 %v313
    %1697 = vmatpush1.msra.mxu0 %v312
    %1698 = vmatprep.subr.mxu0 %v309
    %1699 = vmatpush1.msra.mxu0 %v308
    %1700 = vmatprep.subr.mxu0 %v305
    %1701 = vmatpush1.msra.mxu0 %v304
    %1702 = vmatprep.subr.mxu0 %v301
    %1703 = vmatpush1.msra.mxu0 %v300
    %1704 = vmatprep.subr.mxu0 %v297
    %1705 = vmatpush1.msra.mxu0 %v296
    %1706 = vmatprep.subr.mxu0 %v293
    %1707 = vmatpush1.msra.mxu0 %v292
    %1708 = vmatprep.subr.mxu0 %v289
    %1709 = vmatpush1.msra.mxu0 %v288
    %1710 = vmatprep.subr.mxu0 %v285
    %1711 = vmatpush1.msra.mxu0 %v284
    %1712 = vmatprep.subr.mxu0 %v281
    %1713 = vmatpush1.msra.mxu0 %v280
    %1714 = vmatprep.subr.mxu0 %v277
    %1715 = vmatpush1.msra.mxu0 %v276
    %1716 = vmatprep.subr.mxu0 %v273
    %1717 = vmatpush1.msra.mxu0 %v272
    %1718 = vmatprep.subr.mxu0 %v269
    %1719 = vmatpush1.msra.mxu0 %v268
    %1720 = vmatprep.subr.mxu0 %v265
    %1721 = vmatpush1.msra.mxu0 %v264
    %1722 = vmatprep.subr.mxu0 %v261
    %1723 = vmatpush1.msra.mxu0 %v260
    %1724 = vmatprep.subr.mxu0 %v257
    %1725 = vmatpush1.msra.mxu0 %v256
    %1726 = vmatprep.subr.mxu0 0.0
    %1727 = vmatpush2.msra.mxu0 0.0
    %1728 = vmatprep.subr.mxu0 0.0
    %1729 = vmatpush2.msra.mxu0 0.0
    %1730 = vmatprep.subr.mxu0 0.0
    %1731 = vmatpush2.msra.mxu0 0.0
    %1732 = vmatprep.subr.mxu0 0.0
    %1733 = vmatpush2.msra.mxu0 0.0
    %1734 = vmatprep.subr.mxu0 0.0
    %1735 = vmatpush2.msra.mxu0 0.0
    %1736 = vmatprep.subr.mxu0 0.0
    %1737 = vmatpush2.msra.mxu0 0.0
    %1738 = vmatprep.subr.mxu0 0.0
    %1739 = vmatpush2.msra.mxu0 0.0
    %1740 = vmatprep.subr.mxu0 0.0
    %1741 = vmatpush2.msra.mxu0 0.0
    %1742 = vmatprep.subr.mxu0 0.0
    %1743 = vmatpush2.msra.mxu0 0.0
    %1744 = vmatprep.subr.mxu0 0.0
    %1745 = vmatpush2.msra.mxu0 0.0
    %1746 = vmatprep.subr.mxu0 0.0
    %1747 = vmatpush2.msra.mxu0 0.0
    %1748 = vmatprep.subr.mxu0 0.0
    %1749 = vmatpush2.msra.mxu0 0.0
    %1750 = vmatprep.subr.mxu0 0.0
    %1751 = vmatpush2.msra.mxu0 0.0
    %1752 = vmatprep.subr.mxu0 0.0
    %1753 = vmatpush2.msra.mxu0 0.0
    %1754 = vmatprep.subr.mxu0 0.0
    %1755 = vmatpush2.msra.mxu0 0.0
    %1756 = vmatprep.subr.mxu0 0.0
    %1757 = vmatpush2.msra.mxu0 0.0
    %1758 = vmatprep.mubr.f32.mxu0 0.0
    %1759 = vmatmul.mubr.f32.gmra.mxu0 %v1621
    %v1760 = vpop.f32.mrf.mxu0
    %v1761 = vadd.f32 0.0, %v1760
    %v1762 = vpop.f32.mrf.mxu0
    %v1763 = vadd.f32 0.0, %v1762
    %1764 = vdwg.mxu0
    %v1769 = vrot.slane %v1690, 1
    %v1770 = vrot.slane %v1692, 1
    %v1771 = vrot.slane %v1761, 1
    %v1772 = vrot.slane %v1763, 1
    %v1777 = vadd.f32 %v179, %v1769
    %v1778 = vadd.f32 %v181, %v1770
    %v1779 = vadd.f32 %v250, %v1771
    %v1780 = vadd.f32 %v252, %v1772
    %v1781 = vxor.u32 %v1777, 2147483648
    %v1782 = vmul.f32 %v1781, 1.442695
    %v1783 = vpow.pop %v1782
    %v1784 = vadd.f32 %v1783, 1.0
    %v1785 = vrcp.pop %v1784
    %v1786 = vmul.f32 1.0, %v1785
    %v1787 = vxor.u32 %v1778, 2147483648
    %v1788 = vmul.f32 %v1787, 1.442695
    %v1789 = vpow.pop %v1788
    %v1790 = vadd.f32 %v1789, 1.0
    %v1791 = vrcp.pop %v1790
    %v1792 = vmul.f32 1.0, %v1791
    %v1793 = vtanh.pop %v1779
    %v1794 = vxor.u32 %v1780, 2147483648
    %v1795 = vmul.f32 %v1794, 1.442695
    %v1796 = vpow.pop %v1795
    %v1797 = vadd.f32 %v1796, 1.0
    %v1798 = vrcp.pop %v1797
    %v1799 = vmul.f32 1.0, %v1798
    %v1801 = vrot.slane %v1616, 7
    %v1803 = vmul.f32 %v1792, %v1801
    %v1804 = vmul.f32 %v1786, %v1793
    %v1805 = vadd.f32 %v1803, %v1804
    %v1806 = vtanh.pop %v1805
    %v1807 = vmul.f32 %v1799, %v1806
    %1808 = vst [vmem:[#allocation2] sm:$0x80] %v1807
    %v1809 = vld [vmem:[#allocation2] sm:$0xff]
    %v1810 = vld [vmem:[#allocation9] sm:$0xff]
    %v1811 = vld [vmem:[#allocation9 + $0x8] sm:$0xff]
    %v1812 = vld [vmem:[#allocation9 + $0x10] sm:$0xff]
    %v1813 = vld [vmem:[#allocation9 + $0x18] sm:$0xff]
    %v1814 = vld [vmem:[#allocation9 + $0x20] sm:$0xff]
    %v1815 = vld [vmem:[#allocation9 + $0x28] sm:$0xff]
    %v1816 = vld [vmem:[#allocation9 + $0x30] sm:$0xff]
    %v1817 = vld [vmem:[#allocation9 + $0x38] sm:$0xff]
    %v1818 = vld [vmem:[#allocation9 + $0x40] sm:$0xff]
    %v1819 = vld [vmem:[#allocation9 + $0x48] sm:$0xff]
    %v1820 = vld [vmem:[#allocation9 + $0x50] sm:$0xff]
    %v1821 = vld [vmem:[#allocation9 + $0x58] sm:$0xff]
    %v1822 = vld [vmem:[#allocation9 + $0x60] sm:$0xff]
    %v1823 = vld [vmem:[#allocation9 + $0x68] sm:$0xff]
    %v1824 = vld [vmem:[#allocation9 + $0x70] sm:$0xff]
    %v1825 = vld [vmem:[#allocation9 + $0x78] sm:$0xff]
    %v1826 = vld [vmem:[%s5] sm:$0x1]
    %v1828 = vlaneseq
    %v1829 = vshrl.u32 %v1828, 7
    %v1830 = vsub.s32 0, %v1829
    %v1831 = vrot.slane %v1826, %v1830
    %1833 = vmatprep.subr.mxu0 0.0
    %1834 = vmatpush1.msra.mxu0 %v1825
    %1835 = vmatprep.subr.mxu0 0.0
    %1836 = vmatpush1.msra.mxu0 %v1824
    %1837 = vmatprep.subr.mxu0 0.0
    %1838 = vmatpush1.msra.mxu0 %v1823
    %1839 = vmatprep.subr.mxu0 0.0
    %1840 = vmatpush1.msra.mxu0 %v1822
    %1841 = vmatprep.subr.mxu0 0.0
    %1842 = vmatpush1.msra.mxu0 %v1821
    %1843 = vmatprep.subr.mxu0 0.0
    %1844 = vmatpush1.msra.mxu0 %v1820
    %1845 = vmatprep.subr.mxu0 0.0
    %1846 = vmatpush1.msra.mxu0 %v1819
    %1847 = vmatprep.subr.mxu0 0.0
    %1848 = vmatpush1.msra.mxu0 %v1818
    %1849 = vmatprep.subr.mxu0 0.0
    %1850 = vmatpush1.msra.mxu0 %v1817
    %1851 = vmatprep.subr.mxu0 0.0
    %1852 = vmatpush1.msra.mxu0 %v1816
    %1853 = vmatprep.subr.mxu0 0.0
    %1854 = vmatpush1.msra.mxu0 %v1815
    %1855 = vmatprep.subr.mxu0 0.0
    %1856 = vmatpush1.msra.mxu0 %v1814
    %1857 = vmatprep.subr.mxu0 0.0
    %1858 = vmatpush1.msra.mxu0 %v1813
    %1859 = vmatprep.subr.mxu0 0.0
    %1860 = vmatpush1.msra.mxu0 %v1812
    %1861 = vmatprep.subr.mxu0 0.0
    %1862 = vmatpush1.msra.mxu0 %v1811
    %1863 = vmatprep.subr.mxu0 0.0
    %1864 = vmatpush1.msra.mxu0 %v1810
    %1865 = vmatprep.subr.mxu0 0.0
    %1866 = vmatpush2.msra.mxu0 0.0
    %1867 = vmatprep.subr.mxu0 0.0
    %1868 = vmatpush2.msra.mxu0 0.0
    %1869 = vmatprep.subr.mxu0 0.0
    %1870 = vmatpush2.msra.mxu0 0.0
    %1871 = vmatprep.subr.mxu0 0.0
    %1872 = vmatpush2.msra.mxu0 0.0
    %1873 = vmatprep.subr.mxu0 0.0
    %1874 = vmatpush2.msra.mxu0 0.0
    %1875 = vmatprep.subr.mxu0 0.0
    %1876 = vmatpush2.msra.mxu0 0.0
    %1877 = vmatprep.subr.mxu0 0.0
    %1878 = vmatpush2.msra.mxu0 0.0
    %1879 = vmatprep.subr.mxu0 0.0
    %1880 = vmatpush2.msra.mxu0 0.0
    %1881 = vmatprep.subr.mxu0 0.0
    %1882 = vmatpush2.msra.mxu0 0.0
    %1883 = vmatprep.subr.mxu0 0.0
    %1884 = vmatpush2.msra.mxu0 0.0
    %1885 = vmatprep.subr.mxu0 0.0
    %1886 = vmatpush2.msra.mxu0 0.0
    %1887 = vmatprep.subr.mxu0 0.0
    %1888 = vmatpush2.msra.mxu0 0.0
    %1889 = vmatprep.subr.mxu0 0.0
    %1890 = vmatpush2.msra.mxu0 0.0
    %1891 = vmatprep.subr.mxu0 0.0
    %1892 = vmatpush2.msra.mxu0 0.0
    %1893 = vmatprep.subr.mxu0 0.0
    %1894 = vmatpush2.msra.mxu0 0.0
    %1895 = vmatprep.subr.mxu0 0.0
    %1896 = vmatpush2.msra.mxu0 0.0
    %1897 = vmatprep.mubr.f32.mxu0 0.0
    %1898 = vmatmul.mubr.f32.gmra.mxu0 %v1809
    %v1899 = vpop.f32.mrf.mxu0
    %v1900 = vadd.f32 %v1831, %v1899
    %v1901 = vpop.f32.mrf.mxu0
    %1902 = vdwg.mxu0
    %1903 = vmax.xlane.f32.xlu0 %v1900
    %v1904 = vpop.xlane.xlu0 %1903
    %v1905 = vsub.f32 %v1900, %v1904
    %v1906 = vmul.f32 %v1905, 1.442695
    %v1907 = vpow.pop %v1906
    %1908 = vadd.xlane.f32.xlu0 %v1907
    %v1909 = vpop.xlane.xlu0 %1908
    %v1910 = vlog2.pop %v1909
    %v1911 = vmul.f32 %v1910, 0.6931472
    %v1912 = vsub.f32 %v1905, %v1911
    %1913 = vst [vmem:[#allocation11] sm:$0xff] %v1912
    // Predicated region
    $region42: #{tpu_custom_call.1} parent=1 // pred_check
      _
    $region43: #{tpu_custom_call.1} parent=1 // pred_check_branch
      %1915 = sbr.rel (0) target = $region45
    $region44: #{tpu_custom_call.1} parent=1 // pred_region
      %s1917 = ssub.s32 128, 128
      %1918 = vsyncadd [#allocation5], %s1917
      %s1920 = sshll.u32 [#allocation11], 4
      %s1921 = int_to_ptr.vmem [resolvable:$true] %s1920
      %1923 = dma.vmem_to_hbm [thread:$0]  %s1921, 128, %s6, [#allocation5]
    $region45: #{tpu_custom_call.1} parent=1 // pred_fallthru
      _
    // Predicated region
    $region46: #{tpu_custom_call.1} parent=1 // pred_check
      _
    $region47: #{tpu_custom_call.1} parent=1 // pred_check_branch
      %1925 = sbr.rel (0) target = $region49
    $region48: #{tpu_custom_call.1} parent=1 // pred_region
      %1926 = dma.done [#allocation5], 128
    $region49: #{tpu_custom_call.1} parent=1 // pred_fallthru
      _
    %1927 = vsyncpa [#allocation4], 1
    %1928 = vsyncpa [#allocation7], 1
    %1929 = vsyncpa [#allocation10], 1
    %1930 = vsyncpa [#allocation5], 1

</llo_original>
